<compile_context>
chip_gen: v7x
topology: tpu7x:2x2x1
jax: 0.10.0
libtpu: 0.0.40
codegen_flags: <defaults>
</compile_context>

<pallas_src>
import functools

import jax
import jax.numpy as jnp
import numpy as np
from jax import lax
from jax.experimental import pallas as pl
from jax.experimental.pallas import tpu as pltpu


# ---------------------------------------------------------------------------
# Pallas kernel: the whole recurrence for one batch tile in one invocation.
# ---------------------------------------------------------------------------
def _gru_seq_kernel(gie_ref,    # VMEM (T, Bp, 3Hp) f32 -- emb@W_ie (+ b_i+b_h for t>=1)
                    mkt_ref,    # VMEM (Hp, Sp)     bf16 -- M_k^T (padded)
                    sbias_ref,  # VMEM (Bp, Sp)     f32  -- 0 real slots / -1e9 padded
                    mvwic_ref,  # VMEM (Sp, 3Hp)    bf16 -- M_v @ W_ic (padded)
                    wh_ref,     # VMEM (Hp, 3Hp)    bf16 -- W_h (padded)
                    mask_ref,   # VMEM (T, Bp, 1)   f32
                    out_ref,    # VMEM (Bp, Hp)     f32  -- final hidden
                    *, seq_len, h_pad, unroll):
    T, Hp = seq_len, h_pad

    # ---- Step 0: hidden = emb @ W_ie[:, 2H:3H]  (zero context, no bias, no
    # ---- nonlinearity, no mask -- matches the reference when last_hidden is None).
    h0 = gie_ref[0, :, 2 * Hp:3 * Hp]                       # (Bp, Hp) f32

    # ---- Steps 1..T-1: full memory-augmented GRU cell.
    def step(t, h):
        gie = gie_ref[t]                                    # (Bp, 3Hp) = emb@W_ie + b
        h_b = h.astype(jnp.bfloat16)

        # h @ W_h: independent of the softmax, so the MXU runs concurrently
        # with the XLU/EUP softmax chain below.
        gh = jnp.dot(h_b, wh_ref[...], preferred_element_type=jnp.float32)

        # Memory read: alpha = softmax(h @ M_k^T) over the real slots.
        # (Plain exp like the reference; padded slots get -1e9 -> exp == 0 in f32.)
        logits = jnp.dot(h_b, mkt_ref[...], preferred_element_type=jnp.float32)
        a = jnp.exp(logits + sbias_ref[...])                # (Bp, Sp) f32
        denom = jnp.sum(a, axis=1, keepdims=True)
        alpha = a * pl.reciprocal(denom, approx=True)       # EUP slot

        # gi = emb@W_ie + ctx@W_ic (+ folded b_i+b_h); ctx@W_ic == alpha @ (M_v W_ic).
        gi = gie + jnp.dot(alpha.astype(jnp.bfloat16), mvwic_ref[...],
                           preferred_element_type=jnp.float32)   # (Bp, 3Hp)

        gates = jax.nn.sigmoid(gi[:, :2 * Hp] + gh[:, :2 * Hp])
        r = gates[:, :Hp]
        z = gates[:, Hp:]
        # NOTE: b_h_n is outside r*(...) in the reference; it is folded into gie.
        n = jnp.tanh(gi[:, 2 * Hp:] + r * gh[:, 2 * Hp:])
        h_new = (1.0 - z) * n + z * h

        m = mask_ref[t]                                     # (Bp, 1), binary
        return jnp.where(m != 0.0, h_new, h)

    out_ref[...] = lax.fori_loop(1, T, step, h0, unroll=unroll)


# ---------------------------------------------------------------------------
# Wrapper: weight padding / algebraic folding + pallas_call.
# ---------------------------------------------------------------------------
def gru_encoder_forward(max_step, input_seqs, input_mask, params,
                        *, hidden_size, context_size):
    """input_seqs: (B, S) int32, input_mask: (B, S) float32."""
    embed_table, W_i, W_h, b_i, b_h, M_k, M_v = params
    B, S = input_seqs.shape
    V, E = embed_table.shape
    H = hidden_size
    n_slots = M_k.shape[0]
    T = int(max_step)
    assert 1 <= T <= S
    assert H <= 128 and n_slots <= 128

    # Hardware-friendly padded sizes.
    Bp = 8                      # batch tile -> full sublane tile
    Hp = 128                    # hidden -> full lane tile (per gate chunk)
    Sp = 128                    # memory slots -> full lane tile
    nBt = (B + Bp - 1) // Bp    # batch tiles; grid axis, "parallel" (both v7x TCs)
    Btot = nBt * Bp

    def pad_gates(w, rows_out):
        """(rows, 3H) -> (rows_out, 3*Hp): each H-wide gate chunk gets its own
        128-lane tile; everything else stays zero (padded-lane invariant)."""
        rows = w.shape[0]
        out = jnp.zeros((rows_out, 3 * Hp), jnp.float32)
        for g in range(3):
            out = out.at[:rows, g * Hp:g * Hp + H].set(w[:, g * H:(g + 1) * H])
        return out

    W_ie = W_i[:E, :]                                     # (E, 3H)
    W_ic = W_i[E:, :]                                     # (C, 3H)

    # Precompute / fold weights (per-weight work, not per-token).
    proj = pad_gates(jnp.dot(embed_table, W_ie), V)       # (V, 3Hp)   emb-projection table
    bias = pad_gates(b_i + b_h, 1)                        # (1, 3Hp)
    mvwic = pad_gates(jnp.dot(M_v, W_ic), Sp).astype(jnp.bfloat16)   # (Sp, 3Hp)
    wh = pad_gates(W_h, Hp).astype(jnp.bfloat16)                     # (Hp, 3Hp)
    mkt = (jnp.zeros((Hp, Sp), jnp.float32)
           .at[:H, :n_slots].set(M_k.T).astype(jnp.bfloat16))        # (Hp, Sp)
    sbias = jnp.full((Bp, Sp), -1e9, jnp.float32).at[:, :n_slots].set(0.0)

    # Token ids / mask, padded to full batch tiles.
    ids = jnp.zeros((Btot, T), jnp.int32).at[:B].set(input_seqs[:, :T].astype(jnp.int32))
    mask = jnp.zeros((Btot, T), jnp.float32).at[:B].set(input_mask[:, :T].astype(jnp.float32))

    # Embedding-projection gather in the wrapper (XLA gather over HBM); fold the
    # biases into every step except t=0 (reference step 0 has no bias).
    gie = proj[ids]                                                      # (Btot, T, 3Hp)
    gie = gie.reshape(nBt, Bp, T, 3 * Hp).transpose(0, 2, 1, 3)          # (nBt, T, Bp, 3Hp)
    gie = gie.at[:, 1:].add(bias[None, None])
    mask_k = mask.reshape(nBt, Bp, T).transpose(0, 2, 1)[..., None]      # (nBt, T, Bp, 1)

    kernel = functools.partial(_gru_seq_kernel, seq_len=T, h_pad=Hp,
                               unroll=True if T <= 16 else 4)

    out_p = pl.pallas_call(
        kernel,
        out_shape=jax.ShapeDtypeStruct((nBt, Bp, Hp), jnp.float32),
        grid_spec=pltpu.PrefetchScalarGridSpec(
            num_scalar_prefetch=0,
            grid=(nBt,),
            in_specs=[
                pl.BlockSpec((None, T, Bp, 3 * Hp), lambda i: (i, 0, 0, 0)),  # gie
                pl.BlockSpec((Hp, Sp), lambda i: (0, 0)),                      # M_k^T
                pl.BlockSpec((Bp, Sp), lambda i: (0, 0)),                      # slot bias
                pl.BlockSpec((Sp, 3 * Hp), lambda i: (0, 0)),                  # M_v @ W_ic
                pl.BlockSpec((Hp, 3 * Hp), lambda i: (0, 0)),                  # W_h
                pl.BlockSpec((None, T, Bp, 1), lambda i: (i, 0, 0, 0)),        # mask
            ],
            out_specs=pl.BlockSpec((None, Bp, Hp), lambda i: (i, 0, 0)),
        ),
        compiler_params=pltpu.CompilerParams(
            dimension_semantics=("parallel",)),
    )(gie, mkt, sbias, mvwic, wh, mask_k)

    return out_p.reshape(Btot, Hp)[:B, :H]


# ---------------------------------------------------------------------------
# Pure-JAX reference (mirrors the PyTorch code).
# ---------------------------------------------------------------------------
def reference_forward(max_step, input_seqs, input_mask, params,
                      *, hidden_size, context_size):
    embed_table, W_i, W_h, b_i, b_h, M_k, M_v = params
    B = input_seqs.shape[0]
    H = hidden_size
    embedded = embed_table[input_seqs]
    hdn = None
    for i in range(max_step):
        e = embedded[:, i, :]
        m = input_mask[:, i]
        if hdn is None:
            ctx = jnp.zeros((B, context_size), jnp.float32)
            inp = jnp.concatenate([e, ctx], axis=1)
            hdn = inp @ W_i[:, 2 * H:]
        else:
            a_tilde = jnp.exp(hdn @ M_k.T)
            alpha = a_tilde / jnp.sum(a_tilde, axis=1, keepdims=True)
            ctx = alpha @ M_v
            inp = jnp.concatenate([e, ctx], axis=1)
            gates = jax.nn.sigmoid(inp @ W_i[:, :2 * H] + hdn @ W_h[:, :2 * H]
                                   + b_i[:, :2 * H] + b_h[:, :2 * H])
            r, z = gates[:, :H], gates[:, H:]
            n = jnp.tanh(inp @ W_i[:, 2 * H:] + b_i[:, 2 * H:]
                         + r * (hdn @ W_h[:, 2 * H:]) + b_h[:, 2 * H:])
            h_new = (1.0 - z) * n + z * hdn
            mm = m[:, None]
            hdn = mm * h_new + (1.0 - mm) * hdn
    return hdn


# ---------------------------------------------------------------------------
# Main.
# ---------------------------------------------------------------------------
if __name__ == "__main__":
    vocab_size = 50
    embed_size = 16
    hidden_size = 32
    context_size = 8
    num_slots = 6
    batch = 2
    seq = 8
    max_step = seq

    key = jax.random.PRNGKey(0)
    keys = jax.random.split(key, 10)

    def init_w(k, dims):
        return (0.08 * jax.random.normal(k, dims)).astype(jnp.float32)

    input_size = embed_size + context_size
    embed_table = init_w(keys[0], (vocab_size, embed_size)) / 0.08  # ~N(0,1) like nn.Embedding
    W_i = init_w(keys[1], (input_size, 3 * hidden_size))
    W_h = init_w(keys[2], (hidden_size, 3 * hidden_size))
    b_i = init_w(keys[3], (1, 3 * hidden_size))
    b_h = init_w(keys[4], (1, 3 * hidden_size))
    M_k = init_w(keys[5], (num_slots, hidden_size))
    M_v = init_w(keys[6], (num_slots, context_size))
    params = (embed_table, W_i, W_h, b_i, b_h, M_k, M_v)

    input_seqs = jax.random.randint(keys[7], (batch, seq), 0, vocab_size, dtype=jnp.int32)
    # mask: 1 for valid tokens, last couple of positions of row 1 masked out.
    input_mask = jnp.ones((batch, seq), jnp.float32).at[1, 6:].set(0.0)

    fwd = jax.jit(lambda seqs, msk, prm: gru_encoder_forward(
        max_step, seqs, msk, prm,
        hidden_size=hidden_size, context_size=context_size))

    out = fwd(input_seqs, input_mask, params)
    out = jax.block_until_ready(out)

    ref = reference_forward(max_step, input_seqs, input_mask, params,
                            hidden_size=hidden_size, context_size=context_size)
    ref = jax.block_until_ready(ref)

    np.testing.assert_allclose(np.asarray(out), np.asarray(ref), rtol=2e-2, atol=2e-2)
    print("KERNEL_OK")
</pallas_src>

<mosaic_0001>
module attributes {stable_mosaic.version = 11 : i64} {
  func.func @_gru_seq_kernel(%arg0: i32, %arg1: memref<1x8x8x384xf32, #tpu.memory_space<vmem>>, %arg2: memref<128x128xbf16, #tpu.memory_space<vmem>>, %arg3: memref<8x128xf32, #tpu.memory_space<vmem>>, %arg4: memref<128x384xbf16, #tpu.memory_space<vmem>>, %arg5: memref<128x384xbf16, #tpu.memory_space<vmem>>, %arg6: memref<1x8x8x1xf32, #tpu.memory_space<vmem>>, %arg7: memref<1x8x128xf32, #tpu.memory_space<vmem>>) attributes {dimension_semantics = [#tpu.dimension_semantics<parallel>], iteration_bounds = array<i64: 1>, scalar_prefetch = 0 : i64, scratch_operands = 0 : i64, tpu.core_type = #tpu.core_type<tc>, window_params = [{transform_indices = @transform_0, window_bounds = array<i64: 1, 8, 8, 384>}, {pipeline_mode = #tpu.pipeline_mode<synchronous>, transform_indices = @transform_1, window_bounds = array<i64: 128, 128>}, {pipeline_mode = #tpu.pipeline_mode<synchronous>, transform_indices = @transform_2, window_bounds = array<i64: 8, 128>}, {pipeline_mode = #tpu.pipeline_mode<synchronous>, transform_indices = @transform_3, window_bounds = array<i64: 128, 384>}, {pipeline_mode = #tpu.pipeline_mode<synchronous>, transform_indices = @transform_4, window_bounds = array<i64: 128, 384>}, {transform_indices = @transform_5, window_bounds = array<i64: 1, 8, 8, 1>}, {transform_indices = @transform_6, window_bounds = array<i64: 1, 8, 128>}]} {
    %c0 = arith.constant 0 : index
    %c0_0 = arith.constant 0 : index
    %c0_1 = arith.constant 0 : index
    %c256 = arith.constant 256 : index
    %0 = vector.load %arg1[%c0, %c0_0, %c0_1, %c256] : memref<1x8x8x384xf32, #tpu.memory_space<vmem>>, vector<1x1x8x128xf32>
    %1 = vector.shape_cast %0 : vector<1x1x8x128xf32> to vector<8x128xf32>
    %c1_i32 = arith.constant 1 : i32
    %c0_2 = arith.constant 0 : index
    %2 = arith.index_cast %c1_i32 : i32 to index
    %c0_3 = arith.constant 0 : index
    %c0_4 = arith.constant 0 : index
    %3 = vector.load %arg1[%c0_2, %2, %c0_3, %c0_4] : memref<1x8x8x384xf32, #tpu.memory_space<vmem>>, vector<1x1x8x384xf32>
    %4 = vector.shape_cast %3 : vector<1x1x8x384xf32> to vector<8x384xf32>
    %5 = arith.truncf %1 : vector<8x128xf32> to vector<8x128xbf16>
    %c0_5 = arith.constant 0 : index
    %c0_6 = arith.constant 0 : index
    %6 = vector.load %arg5[%c0_5, %c0_6] : memref<128x384xbf16, #tpu.memory_space<vmem>>, vector<128x384xbf16>
    %cst = arith.constant dense<0.000000e+00> : vector<8x384xf32>
    %7 = tpu.matmul %5, %6, %cst {dimension_numbers = #tpu.dot_dimension_numbers<[1], [0], [0], [1], [0, 0, 1, 1], [], []>} : vector<8x128xbf16>, vector<128x384xbf16>, vector<8x384xf32> -> vector<8x384xf32>
    %c0_7 = arith.constant 0 : index
    %c0_8 = arith.constant 0 : index
    %8 = vector.load %arg2[%c0_7, %c0_8] : memref<128x128xbf16, #tpu.memory_space<vmem>>, vector<128x128xbf16>
    %cst_9 = arith.constant dense<0.000000e+00> : vector<8x128xf32>
    %9 = tpu.matmul %5, %8, %cst_9 {dimension_numbers = #tpu.dot_dimension_numbers<[1], [0], [0], [1], [0, 0, 1, 1], [], []>} : vector<8x128xbf16>, vector<128x128xbf16>, vector<8x128xf32> -> vector<8x128xf32>
    %c0_10 = arith.constant 0 : index
    %c0_11 = arith.constant 0 : index
    %10 = vector.load %arg3[%c0_10, %c0_11] : memref<8x128xf32, #tpu.memory_space<vmem>>, vector<8x128xf32>
    %11 = arith.addf %9, %10 : vector<8x128xf32>
    %12 = math.exp %11 : vector<8x128xf32>
    %cst_12 = arith.constant dense<0.000000e+00> : vector<8xf32>
    %13 = vector.multi_reduction <add>, %12, %cst_12 [1] : vector<8x128xf32> to vector<8xf32>
    %14 = vector.shape_cast %13 : vector<8xf32> to vector<8x1xf32>
    %15 = tpu.reciprocal %14 {approx = true} : vector<8x1xf32> -> vector<8x1xf32>
    %16 = vector.broadcast %15 : vector<8x1xf32> to vector<8x128xf32>
    %17 = arith.mulf %12, %16 : vector<8x128xf32>
    %18 = arith.truncf %17 : vector<8x128xf32> to vector<8x128xbf16>
    %c0_13 = arith.constant 0 : index
    %c0_14 = arith.constant 0 : index
    %19 = vector.load %arg4[%c0_13, %c0_14] : memref<128x384xbf16, #tpu.memory_space<vmem>>, vector<128x384xbf16>
    %cst_15 = arith.constant dense<0.000000e+00> : vector<8x384xf32>
    %20 = tpu.matmul %18, %19, %cst_15 {dimension_numbers = #tpu.dot_dimension_numbers<[1], [0], [0], [1], [0, 0, 1, 1], [], []>} : vector<8x128xbf16>, vector<128x384xbf16>, vector<8x384xf32> -> vector<8x384xf32>
    %21 = arith.addf %4, %20 : vector<8x384xf32>
    %22 = vector.extract_strided_slice %21 {offsets = [0, 0], sizes = [8, 256], strides = [1, 1]} : vector<8x384xf32> to vector<8x256xf32>
    %23 = vector.extract_strided_slice %7 {offsets = [0, 0], sizes = [8, 256], strides = [1, 1]} : vector<8x384xf32> to vector<8x256xf32>
    %24 = arith.addf %22, %23 : vector<8x256xf32>
    %25 = arith.negf %24 : vector<8x256xf32>
    %26 = math.exp %25 : vector<8x256xf32>
    %cst_16 = arith.constant 1.000000e+00 : f32
    %27 = vector.broadcast %cst_16 : f32 to vector<8x256xf32>
    %28 = arith.addf %27, %26 : vector<8x256xf32>
    %29 = arith.divf %27, %28 : vector<8x256xf32>
    %30 = vector.extract_strided_slice %29 {offsets = [0, 0], sizes = [8, 128], strides = [1, 1]} : vector<8x256xf32> to vector<8x128xf32>
    %31 = vector.extract_strided_slice %29 {offsets = [0, 128], sizes = [8, 128], strides = [1, 1]} : vector<8x256xf32> to vector<8x128xf32>
    %32 = vector.extract_strided_slice %21 {offsets = [0, 256], sizes = [8, 128], strides = [1, 1]} : vector<8x384xf32> to vector<8x128xf32>
    %33 = vector.extract_strided_slice %7 {offsets = [0, 256], sizes = [8, 128], strides = [1, 1]} : vector<8x384xf32> to vector<8x128xf32>
    %34 = arith.mulf %30, %33 : vector<8x128xf32>
    %35 = arith.addf %32, %34 : vector<8x128xf32>
    %36 = math.tanh %35 : vector<8x128xf32>
    %cst_17 = arith.constant 1.000000e+00 : f32
    %37 = vector.broadcast %cst_17 : f32 to vector<8x128xf32>
    %38 = arith.subf %37, %31 : vector<8x128xf32>
    %39 = arith.mulf %38, %36 : vector<8x128xf32>
    %40 = arith.mulf %31, %1 : vector<8x128xf32>
    %41 = arith.addf %39, %40 : vector<8x128xf32>
    %c0_18 = arith.constant 0 : index
    %42 = arith.index_cast %c1_i32 : i32 to index
    %c0_19 = arith.constant 0 : index
    %c0_20 = arith.constant 0 : index
    %43 = vector.load %arg6[%c0_18, %42, %c0_19, %c0_20] : memref<1x8x8x1xf32, #tpu.memory_space<vmem>>, vector<1x1x8x1xf32>
    %44 = vector.shape_cast %43 : vector<1x1x8x1xf32> to vector<8x1xf32>
    %cst_21 = arith.constant 0.000000e+00 : f32
    %45 = vector.broadcast %cst_21 : f32 to vector<8x1xf32>
    %46 = arith.cmpf one, %44, %45 : vector<8x1xf32>
    %47 = vector.shape_cast %46 : vector<8x1xi1> to vector<8x1xi1>
    %48 = vector.broadcast %47 : vector<8x1xi1> to vector<8x128xi1>
    %49 = arith.select %48, %41, %1 : vector<8x128xi1>, vector<8x128xf32>
    %c2_i32 = arith.constant 2 : i32
    %c0_22 = arith.constant 0 : index
    %50 = arith.index_cast %c2_i32 : i32 to index
    %c0_23 = arith.constant 0 : index
    %c0_24 = arith.constant 0 : index
    %51 = vector.load %arg1[%c0_22, %50, %c0_23, %c0_24] : memref<1x8x8x384xf32, #tpu.memory_space<vmem>>, vector<1x1x8x384xf32>
    %52 = vector.shape_cast %51 : vector<1x1x8x384xf32> to vector<8x384xf32>
    %53 = arith.truncf %49 : vector<8x128xf32> to vector<8x128xbf16>
    %c0_25 = arith.constant 0 : index
    %c0_26 = arith.constant 0 : index
    %54 = vector.load %arg5[%c0_25, %c0_26] : memref<128x384xbf16, #tpu.memory_space<vmem>>, vector<128x384xbf16>
    %cst_27 = arith.constant dense<0.000000e+00> : vector<8x384xf32>
    %55 = tpu.matmul %53, %54, %cst_27 {dimension_numbers = #tpu.dot_dimension_numbers<[1], [0], [0], [1], [0, 0, 1, 1], [], []>} : vector<8x128xbf16>, vector<128x384xbf16>, vector<8x384xf32> -> vector<8x384xf32>
    %c0_28 = arith.constant 0 : index
    %c0_29 = arith.constant 0 : index
    %56 = vector.load %arg2[%c0_28, %c0_29] : memref<128x128xbf16, #tpu.memory_space<vmem>>, vector<128x128xbf16>
    %cst_30 = arith.constant dense<0.000000e+00> : vector<8x128xf32>
    %57 = tpu.matmul %53, %56, %cst_30 {dimension_numbers = #tpu.dot_dimension_numbers<[1], [0], [0], [1], [0, 0, 1, 1], [], []>} : vector<8x128xbf16>, vector<128x128xbf16>, vector<8x128xf32> -> vector<8x128xf32>
    %c0_31 = arith.constant 0 : index
    %c0_32 = arith.constant 0 : index
    %58 = vector.load %arg3[%c0_31, %c0_32] : memref<8x128xf32, #tpu.memory_space<vmem>>, vector<8x128xf32>
    %59 = arith.addf %57, %58 : vector<8x128xf32>
    %60 = math.exp %59 : vector<8x128xf32>
    %cst_33 = arith.constant dense<0.000000e+00> : vector<8xf32>
    %61 = vector.multi_reduction <add>, %60, %cst_33 [1] : vector<8x128xf32> to vector<8xf32>
    %62 = vector.shape_cast %61 : vector<8xf32> to vector<8x1xf32>
    %63 = tpu.reciprocal %62 {approx = true} : vector<8x1xf32> -> vector<8x1xf32>
    %64 = vector.broadcast %63 : vector<8x1xf32> to vector<8x128xf32>
    %65 = arith.mulf %60, %64 : vector<8x128xf32>
    %66 = arith.truncf %65 : vector<8x128xf32> to vector<8x128xbf16>
    %c0_34 = arith.constant 0 : index
    %c0_35 = arith.constant 0 : index
    %67 = vector.load %arg4[%c0_34, %c0_35] : memref<128x384xbf16, #tpu.memory_space<vmem>>, vector<128x384xbf16>
    %cst_36 = arith.constant dense<0.000000e+00> : vector<8x384xf32>
    %68 = tpu.matmul %66, %67, %cst_36 {dimension_numbers = #tpu.dot_dimension_numbers<[1], [0], [0], [1], [0, 0, 1, 1], [], []>} : vector<8x128xbf16>, vector<128x384xbf16>, vector<8x384xf32> -> vector<8x384xf32>
    %69 = arith.addf %52, %68 : vector<8x384xf32>
    %70 = vector.extract_strided_slice %69 {offsets = [0, 0], sizes = [8, 256], strides = [1, 1]} : vector<8x384xf32> to vector<8x256xf32>
    %71 = vector.extract_strided_slice %55 {offsets = [0, 0], sizes = [8, 256], strides = [1, 1]} : vector<8x384xf32> to vector<8x256xf32>
    %72 = arith.addf %70, %71 : vector<8x256xf32>
    %73 = arith.negf %72 : vector<8x256xf32>
    %74 = math.exp %73 : vector<8x256xf32>
    %cst_37 = arith.constant 1.000000e+00 : f32
    %75 = vector.broadcast %cst_37 : f32 to vector<8x256xf32>
    %76 = arith.addf %75, %74 : vector<8x256xf32>
    %77 = arith.divf %75, %76 : vector<8x256xf32>
    %78 = vector.extract_strided_slice %77 {offsets = [0, 0], sizes = [8, 128], strides = [1, 1]} : vector<8x256xf32> to vector<8x128xf32>
    %79 = vector.extract_strided_slice %77 {offsets = [0, 128], sizes = [8, 128], strides = [1, 1]} : vector<8x256xf32> to vector<8x128xf32>
    %80 = vector.extract_strided_slice %69 {offsets = [0, 256], sizes = [8, 128], strides = [1, 1]} : vector<8x384xf32> to vector<8x128xf32>
    %81 = vector.extract_strided_slice %55 {offsets = [0, 256], sizes = [8, 128], strides = [1, 1]} : vector<8x384xf32> to vector<8x128xf32>
    %82 = arith.mulf %78, %81 : vector<8x128xf32>
    %83 = arith.addf %80, %82 : vector<8x128xf32>
    %84 = math.tanh %83 : vector<8x128xf32>
    %cst_38 = arith.constant 1.000000e+00 : f32
    %85 = vector.broadcast %cst_38 : f32 to vector<8x128xf32>
    %86 = arith.subf %85, %79 : vector<8x128xf32>
    %87 = arith.mulf %86, %84 : vector<8x128xf32>
    %88 = arith.mulf %79, %49 : vector<8x128xf32>
    %89 = arith.addf %87, %88 : vector<8x128xf32>
    %c0_39 = arith.constant 0 : index
    %90 = arith.index_cast %c2_i32 : i32 to index
    %c0_40 = arith.constant 0 : index
    %c0_41 = arith.constant 0 : index
    %91 = vector.load %arg6[%c0_39, %90, %c0_40, %c0_41] : memref<1x8x8x1xf32, #tpu.memory_space<vmem>>, vector<1x1x8x1xf32>
    %92 = vector.shape_cast %91 : vector<1x1x8x1xf32> to vector<8x1xf32>
    %cst_42 = arith.constant 0.000000e+00 : f32
    %93 = vector.broadcast %cst_42 : f32 to vector<8x1xf32>
    %94 = arith.cmpf one, %92, %93 : vector<8x1xf32>
    %95 = vector.shape_cast %94 : vector<8x1xi1> to vector<8x1xi1>
    %96 = vector.broadcast %95 : vector<8x1xi1> to vector<8x128xi1>
    %97 = arith.select %96, %89, %49 : vector<8x128xi1>, vector<8x128xf32>
    %c3_i32 = arith.constant 3 : i32
    %c0_43 = arith.constant 0 : index
    %98 = arith.index_cast %c3_i32 : i32 to index
    %c0_44 = arith.constant 0 : index
    %c0_45 = arith.constant 0 : index
    %99 = vector.load %arg1[%c0_43, %98, %c0_44, %c0_45] : memref<1x8x8x384xf32, #tpu.memory_space<vmem>>, vector<1x1x8x384xf32>
    %100 = vector.shape_cast %99 : vector<1x1x8x384xf32> to vector<8x384xf32>
    %101 = arith.truncf %97 : vector<8x128xf32> to vector<8x128xbf16>
    %c0_46 = arith.constant 0 : index
    %c0_47 = arith.constant 0 : index
    %102 = vector.load %arg5[%c0_46, %c0_47] : memref<128x384xbf16, #tpu.memory_space<vmem>>, vector<128x384xbf16>
    %cst_48 = arith.constant dense<0.000000e+00> : vector<8x384xf32>
    %103 = tpu.matmul %101, %102, %cst_48 {dimension_numbers = #tpu.dot_dimension_numbers<[1], [0], [0], [1], [0, 0, 1, 1], [], []>} : vector<8x128xbf16>, vector<128x384xbf16>, vector<8x384xf32> -> vector<8x384xf32>
    %c0_49 = arith.constant 0 : index
    %c0_50 = arith.constant 0 : index
    %104 = vector.load %arg2[%c0_49, %c0_50] : memref<128x128xbf16, #tpu.memory_space<vmem>>, vector<128x128xbf16>
    %cst_51 = arith.constant dense<0.000000e+00> : vector<8x128xf32>
    %105 = tpu.matmul %101, %104, %cst_51 {dimension_numbers = #tpu.dot_dimension_numbers<[1], [0], [0], [1], [0, 0, 1, 1], [], []>} : vector<8x128xbf16>, vector<128x128xbf16>, vector<8x128xf32> -> vector<8x128xf32>
    %c0_52 = arith.constant 0 : index
    %c0_53 = arith.constant 0 : index
    %106 = vector.load %arg3[%c0_52, %c0_53] : memref<8x128xf32, #tpu.memory_space<vmem>>, vector<8x128xf32>
    %107 = arith.addf %105, %106 : vector<8x128xf32>
    %108 = math.exp %107 : vector<8x128xf32>
    %cst_54 = arith.constant dense<0.000000e+00> : vector<8xf32>
    %109 = vector.multi_reduction <add>, %108, %cst_54 [1] : vector<8x128xf32> to vector<8xf32>
    %110 = vector.shape_cast %109 : vector<8xf32> to vector<8x1xf32>
    %111 = tpu.reciprocal %110 {approx = true} : vector<8x1xf32> -> vector<8x1xf32>
    %112 = vector.broadcast %111 : vector<8x1xf32> to vector<8x128xf32>
    %113 = arith.mulf %108, %112 : vector<8x128xf32>
    %114 = arith.truncf %113 : vector<8x128xf32> to vector<8x128xbf16>
    %c0_55 = arith.constant 0 : index
    %c0_56 = arith.constant 0 : index
    %115 = vector.load %arg4[%c0_55, %c0_56] : memref<128x384xbf16, #tpu.memory_space<vmem>>, vector<128x384xbf16>
    %cst_57 = arith.constant dense<0.000000e+00> : vector<8x384xf32>
    %116 = tpu.matmul %114, %115, %cst_57 {dimension_numbers = #tpu.dot_dimension_numbers<[1], [0], [0], [1], [0, 0, 1, 1], [], []>} : vector<8x128xbf16>, vector<128x384xbf16>, vector<8x384xf32> -> vector<8x384xf32>
    %117 = arith.addf %100, %116 : vector<8x384xf32>
    %118 = vector.extract_strided_slice %117 {offsets = [0, 0], sizes = [8, 256], strides = [1, 1]} : vector<8x384xf32> to vector<8x256xf32>
    %119 = vector.extract_strided_slice %103 {offsets = [0, 0], sizes = [8, 256], strides = [1, 1]} : vector<8x384xf32> to vector<8x256xf32>
    %120 = arith.addf %118, %119 : vector<8x256xf32>
    %121 = arith.negf %120 : vector<8x256xf32>
    %122 = math.exp %121 : vector<8x256xf32>
    %cst_58 = arith.constant 1.000000e+00 : f32
    %123 = vector.broadcast %cst_58 : f32 to vector<8x256xf32>
    %124 = arith.addf %123, %122 : vector<8x256xf32>
    %125 = arith.divf %123, %124 : vector<8x256xf32>
    %126 = vector.extract_strided_slice %125 {offsets = [0, 0], sizes = [8, 128], strides = [1, 1]} : vector<8x256xf32> to vector<8x128xf32>
    %127 = vector.extract_strided_slice %125 {offsets = [0, 128], sizes = [8, 128], strides = [1, 1]} : vector<8x256xf32> to vector<8x128xf32>
    %128 = vector.extract_strided_slice %117 {offsets = [0, 256], sizes = [8, 128], strides = [1, 1]} : vector<8x384xf32> to vector<8x128xf32>
    %129 = vector.extract_strided_slice %103 {offsets = [0, 256], sizes = [8, 128], strides = [1, 1]} : vector<8x384xf32> to vector<8x128xf32>
    %130 = arith.mulf %126, %129 : vector<8x128xf32>
    %131 = arith.addf %128, %130 : vector<8x128xf32>
    %132 = math.tanh %131 : vector<8x128xf32>
    %cst_59 = arith.constant 1.000000e+00 : f32
    %133 = vector.broadcast %cst_59 : f32 to vector<8x128xf32>
    %134 = arith.subf %133, %127 : vector<8x128xf32>
    %135 = arith.mulf %134, %132 : vector<8x128xf32>
    %136 = arith.mulf %127, %97 : vector<8x128xf32>
    %137 = arith.addf %135, %136 : vector<8x128xf32>
    %c0_60 = arith.constant 0 : index
    %138 = arith.index_cast %c3_i32 : i32 to index
    %c0_61 = arith.constant 0 : index
    %c0_62 = arith.constant 0 : index
    %139 = vector.load %arg6[%c0_60, %138, %c0_61, %c0_62] : memref<1x8x8x1xf32, #tpu.memory_space<vmem>>, vector<1x1x8x1xf32>
    %140 = vector.shape_cast %139 : vector<1x1x8x1xf32> to vector<8x1xf32>
    %cst_63 = arith.constant 0.000000e+00 : f32
    %141 = vector.broadcast %cst_63 : f32 to vector<8x1xf32>
    %142 = arith.cmpf one, %140, %141 : vector<8x1xf32>
    %143 = vector.shape_cast %142 : vector<8x1xi1> to vector<8x1xi1>
    %144 = vector.broadcast %143 : vector<8x1xi1> to vector<8x128xi1>
    %145 = arith.select %144, %137, %97 : vector<8x128xi1>, vector<8x128xf32>
    %c4_i32 = arith.constant 4 : i32
    %c0_64 = arith.constant 0 : index
    %146 = arith.index_cast %c4_i32 : i32 to index
    %c0_65 = arith.constant 0 : index
    %c0_66 = arith.constant 0 : index
    %147 = vector.load %arg1[%c0_64, %146, %c0_65, %c0_66] : memref<1x8x8x384xf32, #tpu.memory_space<vmem>>, vector<1x1x8x384xf32>
    %148 = vector.shape_cast %147 : vector<1x1x8x384xf32> to vector<8x384xf32>
    %149 = arith.truncf %145 : vector<8x128xf32> to vector<8x128xbf16>
    %c0_67 = arith.constant 0 : index
    %c0_68 = arith.constant 0 : index
    %150 = vector.load %arg5[%c0_67, %c0_68] : memref<128x384xbf16, #tpu.memory_space<vmem>>, vector<128x384xbf16>
    %cst_69 = arith.constant dense<0.000000e+00> : vector<8x384xf32>
    %151 = tpu.matmul %149, %150, %cst_69 {dimension_numbers = #tpu.dot_dimension_numbers<[1], [0], [0], [1], [0, 0, 1, 1], [], []>} : vector<8x128xbf16>, vector<128x384xbf16>, vector<8x384xf32> -> vector<8x384xf32>
    %c0_70 = arith.constant 0 : index
    %c0_71 = arith.constant 0 : index
    %152 = vector.load %arg2[%c0_70, %c0_71] : memref<128x128xbf16, #tpu.memory_space<vmem>>, vector<128x128xbf16>
    %cst_72 = arith.constant dense<0.000000e+00> : vector<8x128xf32>
    %153 = tpu.matmul %149, %152, %cst_72 {dimension_numbers = #tpu.dot_dimension_numbers<[1], [0], [0], [1], [0, 0, 1, 1], [], []>} : vector<8x128xbf16>, vector<128x128xbf16>, vector<8x128xf32> -> vector<8x128xf32>
    %c0_73 = arith.constant 0 : index
    %c0_74 = arith.constant 0 : index
    %154 = vector.load %arg3[%c0_73, %c0_74] : memref<8x128xf32, #tpu.memory_space<vmem>>, vector<8x128xf32>
    %155 = arith.addf %153, %154 : vector<8x128xf32>
    %156 = math.exp %155 : vector<8x128xf32>
    %cst_75 = arith.constant dense<0.000000e+00> : vector<8xf32>
    %157 = vector.multi_reduction <add>, %156, %cst_75 [1] : vector<8x128xf32> to vector<8xf32>
    %158 = vector.shape_cast %157 : vector<8xf32> to vector<8x1xf32>
    %159 = tpu.reciprocal %158 {approx = true} : vector<8x1xf32> -> vector<8x1xf32>
    %160 = vector.broadcast %159 : vector<8x1xf32> to vector<8x128xf32>
    %161 = arith.mulf %156, %160 : vector<8x128xf32>
    %162 = arith.truncf %161 : vector<8x128xf32> to vector<8x128xbf16>
    %c0_76 = arith.constant 0 : index
    %c0_77 = arith.constant 0 : index
    %163 = vector.load %arg4[%c0_76, %c0_77] : memref<128x384xbf16, #tpu.memory_space<vmem>>, vector<128x384xbf16>
    %cst_78 = arith.constant dense<0.000000e+00> : vector<8x384xf32>
    %164 = tpu.matmul %162, %163, %cst_78 {dimension_numbers = #tpu.dot_dimension_numbers<[1], [0], [0], [1], [0, 0, 1, 1], [], []>} : vector<8x128xbf16>, vector<128x384xbf16>, vector<8x384xf32> -> vector<8x384xf32>
    %165 = arith.addf %148, %164 : vector<8x384xf32>
    %166 = vector.extract_strided_slice %165 {offsets = [0, 0], sizes = [8, 256], strides = [1, 1]} : vector<8x384xf32> to vector<8x256xf32>
    %167 = vector.extract_strided_slice %151 {offsets = [0, 0], sizes = [8, 256], strides = [1, 1]} : vector<8x384xf32> to vector<8x256xf32>
    %168 = arith.addf %166, %167 : vector<8x256xf32>
    %169 = arith.negf %168 : vector<8x256xf32>
    %170 = math.exp %169 : vector<8x256xf32>
    %cst_79 = arith.constant 1.000000e+00 : f32
    %171 = vector.broadcast %cst_79 : f32 to vector<8x256xf32>
    %172 = arith.addf %171, %170 : vector<8x256xf32>
    %173 = arith.divf %171, %172 : vector<8x256xf32>
    %174 = vector.extract_strided_slice %173 {offsets = [0, 0], sizes = [8, 128], strides = [1, 1]} : vector<8x256xf32> to vector<8x128xf32>
    %175 = vector.extract_strided_slice %173 {offsets = [0, 128], sizes = [8, 128], strides = [1, 1]} : vector<8x256xf32> to vector<8x128xf32>
    %176 = vector.extract_strided_slice %165 {offsets = [0, 256], sizes = [8, 128], strides = [1, 1]} : vector<8x384xf32> to vector<8x128xf32>
    %177 = vector.extract_strided_slice %151 {offsets = [0, 256], sizes = [8, 128], strides = [1, 1]} : vector<8x384xf32> to vector<8x128xf32>
    %178 = arith.mulf %174, %177 : vector<8x128xf32>
    %179 = arith.addf %176, %178 : vector<8x128xf32>
    %180 = math.tanh %179 : vector<8x128xf32>
    %cst_80 = arith.constant 1.000000e+00 : f32
    %181 = vector.broadcast %cst_80 : f32 to vector<8x128xf32>
    %182 = arith.subf %181, %175 : vector<8x128xf32>
    %183 = arith.mulf %182, %180 : vector<8x128xf32>
    %184 = arith.mulf %175, %145 : vector<8x128xf32>
    %185 = arith.addf %183, %184 : vector<8x128xf32>
    %c0_81 = arith.constant 0 : index
    %186 = arith.index_cast %c4_i32 : i32 to index
    %c0_82 = arith.constant 0 : index
    %c0_83 = arith.constant 0 : index
    %187 = vector.load %arg6[%c0_81, %186, %c0_82, %c0_83] : memref<1x8x8x1xf32, #tpu.memory_space<vmem>>, vector<1x1x8x1xf32>
    %188 = vector.shape_cast %187 : vector<1x1x8x1xf32> to vector<8x1xf32>
    %cst_84 = arith.constant 0.000000e+00 : f32
    %189 = vector.broadcast %cst_84 : f32 to vector<8x1xf32>
    %190 = arith.cmpf one, %188, %189 : vector<8x1xf32>
    %191 = vector.shape_cast %190 : vector<8x1xi1> to vector<8x1xi1>
    %192 = vector.broadcast %191 : vector<8x1xi1> to vector<8x128xi1>
    %193 = arith.select %192, %185, %145 : vector<8x128xi1>, vector<8x128xf32>
    %c5_i32 = arith.constant 5 : i32
    %c0_85 = arith.constant 0 : index
    %194 = arith.index_cast %c5_i32 : i32 to index
    %c0_86 = arith.constant 0 : index
    %c0_87 = arith.constant 0 : index
    %195 = vector.load %arg1[%c0_85, %194, %c0_86, %c0_87] : memref<1x8x8x384xf32, #tpu.memory_space<vmem>>, vector<1x1x8x384xf32>
    %196 = vector.shape_cast %195 : vector<1x1x8x384xf32> to vector<8x384xf32>
    %197 = arith.truncf %193 : vector<8x128xf32> to vector<8x128xbf16>
    %c0_88 = arith.constant 0 : index
    %c0_89 = arith.constant 0 : index
    %198 = vector.load %arg5[%c0_88, %c0_89] : memref<128x384xbf16, #tpu.memory_space<vmem>>, vector<128x384xbf16>
    %cst_90 = arith.constant dense<0.000000e+00> : vector<8x384xf32>
    %199 = tpu.matmul %197, %198, %cst_90 {dimension_numbers = #tpu.dot_dimension_numbers<[1], [0], [0], [1], [0, 0, 1, 1], [], []>} : vector<8x128xbf16>, vector<128x384xbf16>, vector<8x384xf32> -> vector<8x384xf32>
    %c0_91 = arith.constant 0 : index
    %c0_92 = arith.constant 0 : index
    %200 = vector.load %arg2[%c0_91, %c0_92] : memref<128x128xbf16, #tpu.memory_space<vmem>>, vector<128x128xbf16>
    %cst_93 = arith.constant dense<0.000000e+00> : vector<8x128xf32>
    %201 = tpu.matmul %197, %200, %cst_93 {dimension_numbers = #tpu.dot_dimension_numbers<[1], [0], [0], [1], [0, 0, 1, 1], [], []>} : vector<8x128xbf16>, vector<128x128xbf16>, vector<8x128xf32> -> vector<8x128xf32>
    %c0_94 = arith.constant 0 : index
    %c0_95 = arith.constant 0 : index
    %202 = vector.load %arg3[%c0_94, %c0_95] : memref<8x128xf32, #tpu.memory_space<vmem>>, vector<8x128xf32>
    %203 = arith.addf %201, %202 : vector<8x128xf32>
    %204 = math.exp %203 : vector<8x128xf32>
    %cst_96 = arith.constant dense<0.000000e+00> : vector<8xf32>
    %205 = vector.multi_reduction <add>, %204, %cst_96 [1] : vector<8x128xf32> to vector<8xf32>
    %206 = vector.shape_cast %205 : vector<8xf32> to vector<8x1xf32>
    %207 = tpu.reciprocal %206 {approx = true} : vector<8x1xf32> -> vector<8x1xf32>
    %208 = vector.broadcast %207 : vector<8x1xf32> to vector<8x128xf32>
    %209 = arith.mulf %204, %208 : vector<8x128xf32>
    %210 = arith.truncf %209 : vector<8x128xf32> to vector<8x128xbf16>
    %c0_97 = arith.constant 0 : index
    %c0_98 = arith.constant 0 : index
    %211 = vector.load %arg4[%c0_97, %c0_98] : memref<128x384xbf16, #tpu.memory_space<vmem>>, vector<128x384xbf16>
    %cst_99 = arith.constant dense<0.000000e+00> : vector<8x384xf32>
    %212 = tpu.matmul %210, %211, %cst_99 {dimension_numbers = #tpu.dot_dimension_numbers<[1], [0], [0], [1], [0, 0, 1, 1], [], []>} : vector<8x128xbf16>, vector<128x384xbf16>, vector<8x384xf32> -> vector<8x384xf32>
    %213 = arith.addf %196, %212 : vector<8x384xf32>
    %214 = vector.extract_strided_slice %213 {offsets = [0, 0], sizes = [8, 256], strides = [1, 1]} : vector<8x384xf32> to vector<8x256xf32>
    %215 = vector.extract_strided_slice %199 {offsets = [0, 0], sizes = [8, 256], strides = [1, 1]} : vector<8x384xf32> to vector<8x256xf32>
    %216 = arith.addf %214, %215 : vector<8x256xf32>
    %217 = arith.negf %216 : vector<8x256xf32>
    %218 = math.exp %217 : vector<8x256xf32>
    %cst_100 = arith.constant 1.000000e+00 : f32
    %219 = vector.broadcast %cst_100 : f32 to vector<8x256xf32>
    %220 = arith.addf %219, %218 : vector<8x256xf32>
    %221 = arith.divf %219, %220 : vector<8x256xf32>
    %222 = vector.extract_strided_slice %221 {offsets = [0, 0], sizes = [8, 128], strides = [1, 1]} : vector<8x256xf32> to vector<8x128xf32>
    %223 = vector.extract_strided_slice %221 {offsets = [0, 128], sizes = [8, 128], strides = [1, 1]} : vector<8x256xf32> to vector<8x128xf32>
    %224 = vector.extract_strided_slice %213 {offsets = [0, 256], sizes = [8, 128], strides = [1, 1]} : vector<8x384xf32> to vector<8x128xf32>
    %225 = vector.extract_strided_slice %199 {offsets = [0, 256], sizes = [8, 128], strides = [1, 1]} : vector<8x384xf32> to vector<8x128xf32>
    %226 = arith.mulf %222, %225 : vector<8x128xf32>
    %227 = arith.addf %224, %226 : vector<8x128xf32>
    %228 = math.tanh %227 : vector<8x128xf32>
    %cst_101 = arith.constant 1.000000e+00 : f32
    %229 = vector.broadcast %cst_101 : f32 to vector<8x128xf32>
    %230 = arith.subf %229, %223 : vector<8x128xf32>
    %231 = arith.mulf %230, %228 : vector<8x128xf32>
    %232 = arith.mulf %223, %193 : vector<8x128xf32>
    %233 = arith.addf %231, %232 : vector<8x128xf32>
    %c0_102 = arith.constant 0 : index
    %234 = arith.index_cast %c5_i32 : i32 to index
    %c0_103 = arith.constant 0 : index
    %c0_104 = arith.constant 0 : index
    %235 = vector.load %arg6[%c0_102, %234, %c0_103, %c0_104] : memref<1x8x8x1xf32, #tpu.memory_space<vmem>>, vector<1x1x8x1xf32>
    %236 = vector.shape_cast %235 : vector<1x1x8x1xf32> to vector<8x1xf32>
    %cst_105 = arith.constant 0.000000e+00 : f32
    %237 = vector.broadcast %cst_105 : f32 to vector<8x1xf32>
    %238 = arith.cmpf one, %236, %237 : vector<8x1xf32>
    %239 = vector.shape_cast %238 : vector<8x1xi1> to vector<8x1xi1>
    %240 = vector.broadcast %239 : vector<8x1xi1> to vector<8x128xi1>
    %241 = arith.select %240, %233, %193 : vector<8x128xi1>, vector<8x128xf32>
    %c6_i32 = arith.constant 6 : i32
    %c0_106 = arith.constant 0 : index
    %242 = arith.index_cast %c6_i32 : i32 to index
    %c0_107 = arith.constant 0 : index
    %c0_108 = arith.constant 0 : index
    %243 = vector.load %arg1[%c0_106, %242, %c0_107, %c0_108] : memref<1x8x8x384xf32, #tpu.memory_space<vmem>>, vector<1x1x8x384xf32>
    %244 = vector.shape_cast %243 : vector<1x1x8x384xf32> to vector<8x384xf32>
    %245 = arith.truncf %241 : vector<8x128xf32> to vector<8x128xbf16>
    %c0_109 = arith.constant 0 : index
    %c0_110 = arith.constant 0 : index
    %246 = vector.load %arg5[%c0_109, %c0_110] : memref<128x384xbf16, #tpu.memory_space<vmem>>, vector<128x384xbf16>
    %cst_111 = arith.constant dense<0.000000e+00> : vector<8x384xf32>
    %247 = tpu.matmul %245, %246, %cst_111 {dimension_numbers = #tpu.dot_dimension_numbers<[1], [0], [0], [1], [0, 0, 1, 1], [], []>} : vector<8x128xbf16>, vector<128x384xbf16>, vector<8x384xf32> -> vector<8x384xf32>
    %c0_112 = arith.constant 0 : index
    %c0_113 = arith.constant 0 : index
    %248 = vector.load %arg2[%c0_112, %c0_113] : memref<128x128xbf16, #tpu.memory_space<vmem>>, vector<128x128xbf16>
    %cst_114 = arith.constant dense<0.000000e+00> : vector<8x128xf32>
    %249 = tpu.matmul %245, %248, %cst_114 {dimension_numbers = #tpu.dot_dimension_numbers<[1], [0], [0], [1], [0, 0, 1, 1], [], []>} : vector<8x128xbf16>, vector<128x128xbf16>, vector<8x128xf32> -> vector<8x128xf32>
    %c0_115 = arith.constant 0 : index
    %c0_116 = arith.constant 0 : index
    %250 = vector.load %arg3[%c0_115, %c0_116] : memref<8x128xf32, #tpu.memory_space<vmem>>, vector<8x128xf32>
    %251 = arith.addf %249, %250 : vector<8x128xf32>
    %252 = math.exp %251 : vector<8x128xf32>
    %cst_117 = arith.constant dense<0.000000e+00> : vector<8xf32>
    %253 = vector.multi_reduction <add>, %252, %cst_117 [1] : vector<8x128xf32> to vector<8xf32>
    %254 = vector.shape_cast %253 : vector<8xf32> to vector<8x1xf32>
    %255 = tpu.reciprocal %254 {approx = true} : vector<8x1xf32> -> vector<8x1xf32>
    %256 = vector.broadcast %255 : vector<8x1xf32> to vector<8x128xf32>
    %257 = arith.mulf %252, %256 : vector<8x128xf32>
    %258 = arith.truncf %257 : vector<8x128xf32> to vector<8x128xbf16>
    %c0_118 = arith.constant 0 : index
    %c0_119 = arith.constant 0 : index
    %259 = vector.load %arg4[%c0_118, %c0_119] : memref<128x384xbf16, #tpu.memory_space<vmem>>, vector<128x384xbf16>
    %cst_120 = arith.constant dense<0.000000e+00> : vector<8x384xf32>
    %260 = tpu.matmul %258, %259, %cst_120 {dimension_numbers = #tpu.dot_dimension_numbers<[1], [0], [0], [1], [0, 0, 1, 1], [], []>} : vector<8x128xbf16>, vector<128x384xbf16>, vector<8x384xf32> -> vector<8x384xf32>
    %261 = arith.addf %244, %260 : vector<8x384xf32>
    %262 = vector.extract_strided_slice %261 {offsets = [0, 0], sizes = [8, 256], strides = [1, 1]} : vector<8x384xf32> to vector<8x256xf32>
    %263 = vector.extract_strided_slice %247 {offsets = [0, 0], sizes = [8, 256], strides = [1, 1]} : vector<8x384xf32> to vector<8x256xf32>
    %264 = arith.addf %262, %263 : vector<8x256xf32>
    %265 = arith.negf %264 : vector<8x256xf32>
    %266 = math.exp %265 : vector<8x256xf32>
    %cst_121 = arith.constant 1.000000e+00 : f32
    %267 = vector.broadcast %cst_121 : f32 to vector<8x256xf32>
    %268 = arith.addf %267, %266 : vector<8x256xf32>
    %269 = arith.divf %267, %268 : vector<8x256xf32>
    %270 = vector.extract_strided_slice %269 {offsets = [0, 0], sizes = [8, 128], strides = [1, 1]} : vector<8x256xf32> to vector<8x128xf32>
    %271 = vector.extract_strided_slice %269 {offsets = [0, 128], sizes = [8, 128], strides = [1, 1]} : vector<8x256xf32> to vector<8x128xf32>
    %272 = vector.extract_strided_slice %261 {offsets = [0, 256], sizes = [8, 128], strides = [1, 1]} : vector<8x384xf32> to vector<8x128xf32>
    %273 = vector.extract_strided_slice %247 {offsets = [0, 256], sizes = [8, 128], strides = [1, 1]} : vector<8x384xf32> to vector<8x128xf32>
    %274 = arith.mulf %270, %273 : vector<8x128xf32>
    %275 = arith.addf %272, %274 : vector<8x128xf32>
    %276 = math.tanh %275 : vector<8x128xf32>
    %cst_122 = arith.constant 1.000000e+00 : f32
    %277 = vector.broadcast %cst_122 : f32 to vector<8x128xf32>
    %278 = arith.subf %277, %271 : vector<8x128xf32>
    %279 = arith.mulf %278, %276 : vector<8x128xf32>
    %280 = arith.mulf %271, %241 : vector<8x128xf32>
    %281 = arith.addf %279, %280 : vector<8x128xf32>
    %c0_123 = arith.constant 0 : index
    %282 = arith.index_cast %c6_i32 : i32 to index
    %c0_124 = arith.constant 0 : index
    %c0_125 = arith.constant 0 : index
    %283 = vector.load %arg6[%c0_123, %282, %c0_124, %c0_125] : memref<1x8x8x1xf32, #tpu.memory_space<vmem>>, vector<1x1x8x1xf32>
    %284 = vector.shape_cast %283 : vector<1x1x8x1xf32> to vector<8x1xf32>
    %cst_126 = arith.constant 0.000000e+00 : f32
    %285 = vector.broadcast %cst_126 : f32 to vector<8x1xf32>
    %286 = arith.cmpf one, %284, %285 : vector<8x1xf32>
    %287 = vector.shape_cast %286 : vector<8x1xi1> to vector<8x1xi1>
    %288 = vector.broadcast %287 : vector<8x1xi1> to vector<8x128xi1>
    %289 = arith.select %288, %281, %241 : vector<8x128xi1>, vector<8x128xf32>
    %c7_i32 = arith.constant 7 : i32
    %c0_127 = arith.constant 0 : index
    %290 = arith.index_cast %c7_i32 : i32 to index
    %c0_128 = arith.constant 0 : index
    %c0_129 = arith.constant 0 : index
    %291 = vector.load %arg1[%c0_127, %290, %c0_128, %c0_129] : memref<1x8x8x384xf32, #tpu.memory_space<vmem>>, vector<1x1x8x384xf32>
    %292 = vector.shape_cast %291 : vector<1x1x8x384xf32> to vector<8x384xf32>
    %293 = arith.truncf %289 : vector<8x128xf32> to vector<8x128xbf16>
    %c0_130 = arith.constant 0 : index
    %c0_131 = arith.constant 0 : index
    %294 = vector.load %arg5[%c0_130, %c0_131] : memref<128x384xbf16, #tpu.memory_space<vmem>>, vector<128x384xbf16>
    %cst_132 = arith.constant dense<0.000000e+00> : vector<8x384xf32>
    %295 = tpu.matmul %293, %294, %cst_132 {dimension_numbers = #tpu.dot_dimension_numbers<[1], [0], [0], [1], [0, 0, 1, 1], [], []>} : vector<8x128xbf16>, vector<128x384xbf16>, vector<8x384xf32> -> vector<8x384xf32>
    %c0_133 = arith.constant 0 : index
    %c0_134 = arith.constant 0 : index
    %296 = vector.load %arg2[%c0_133, %c0_134] : memref<128x128xbf16, #tpu.memory_space<vmem>>, vector<128x128xbf16>
    %cst_135 = arith.constant dense<0.000000e+00> : vector<8x128xf32>
    %297 = tpu.matmul %293, %296, %cst_135 {dimension_numbers = #tpu.dot_dimension_numbers<[1], [0], [0], [1], [0, 0, 1, 1], [], []>} : vector<8x128xbf16>, vector<128x128xbf16>, vector<8x128xf32> -> vector<8x128xf32>
    %c0_136 = arith.constant 0 : index
    %c0_137 = arith.constant 0 : index
    %298 = vector.load %arg3[%c0_136, %c0_137] : memref<8x128xf32, #tpu.memory_space<vmem>>, vector<8x128xf32>
    %299 = arith.addf %297, %298 : vector<8x128xf32>
    %300 = math.exp %299 : vector<8x128xf32>
    %cst_138 = arith.constant dense<0.000000e+00> : vector<8xf32>
    %301 = vector.multi_reduction <add>, %300, %cst_138 [1] : vector<8x128xf32> to vector<8xf32>
    %302 = vector.shape_cast %301 : vector<8xf32> to vector<8x1xf32>
    %303 = tpu.reciprocal %302 {approx = true} : vector<8x1xf32> -> vector<8x1xf32>
    %304 = vector.broadcast %303 : vector<8x1xf32> to vector<8x128xf32>
    %305 = arith.mulf %300, %304 : vector<8x128xf32>
    %306 = arith.truncf %305 : vector<8x128xf32> to vector<8x128xbf16>
    %c0_139 = arith.constant 0 : index
    %c0_140 = arith.constant 0 : index
    %307 = vector.load %arg4[%c0_139, %c0_140] : memref<128x384xbf16, #tpu.memory_space<vmem>>, vector<128x384xbf16>
    %cst_141 = arith.constant dense<0.000000e+00> : vector<8x384xf32>
    %308 = tpu.matmul %306, %307, %cst_141 {dimension_numbers = #tpu.dot_dimension_numbers<[1], [0], [0], [1], [0, 0, 1, 1], [], []>} : vector<8x128xbf16>, vector<128x384xbf16>, vector<8x384xf32> -> vector<8x384xf32>
    %309 = arith.addf %292, %308 : vector<8x384xf32>
    %310 = vector.extract_strided_slice %309 {offsets = [0, 0], sizes = [8, 256], strides = [1, 1]} : vector<8x384xf32> to vector<8x256xf32>
    %311 = vector.extract_strided_slice %295 {offsets = [0, 0], sizes = [8, 256], strides = [1, 1]} : vector<8x384xf32> to vector<8x256xf32>
    %312 = arith.addf %310, %311 : vector<8x256xf32>
    %313 = arith.negf %312 : vector<8x256xf32>
    %314 = math.exp %313 : vector<8x256xf32>
    %cst_142 = arith.constant 1.000000e+00 : f32
    %315 = vector.broadcast %cst_142 : f32 to vector<8x256xf32>
    %316 = arith.addf %315, %314 : vector<8x256xf32>
    %317 = arith.divf %315, %316 : vector<8x256xf32>
    %318 = vector.extract_strided_slice %317 {offsets = [0, 0], sizes = [8, 128], strides = [1, 1]} : vector<8x256xf32> to vector<8x128xf32>
    %319 = vector.extract_strided_slice %317 {offsets = [0, 128], sizes = [8, 128], strides = [1, 1]} : vector<8x256xf32> to vector<8x128xf32>
    %320 = vector.extract_strided_slice %309 {offsets = [0, 256], sizes = [8, 128], strides = [1, 1]} : vector<8x384xf32> to vector<8x128xf32>
    %321 = vector.extract_strided_slice %295 {offsets = [0, 256], sizes = [8, 128], strides = [1, 1]} : vector<8x384xf32> to vector<8x128xf32>
    %322 = arith.mulf %318, %321 : vector<8x128xf32>
    %323 = arith.addf %320, %322 : vector<8x128xf32>
    %324 = math.tanh %323 : vector<8x128xf32>
    %cst_143 = arith.constant 1.000000e+00 : f32
    %325 = vector.broadcast %cst_143 : f32 to vector<8x128xf32>
    %326 = arith.subf %325, %319 : vector<8x128xf32>
    %327 = arith.mulf %326, %324 : vector<8x128xf32>
    %328 = arith.mulf %319, %289 : vector<8x128xf32>
    %329 = arith.addf %327, %328 : vector<8x128xf32>
    %c0_144 = arith.constant 0 : index
    %330 = arith.index_cast %c7_i32 : i32 to index
    %c0_145 = arith.constant 0 : index
    %c0_146 = arith.constant 0 : index
    %331 = vector.load %arg6[%c0_144, %330, %c0_145, %c0_146] : memref<1x8x8x1xf32, #tpu.memory_space<vmem>>, vector<1x1x8x1xf32>
    %332 = vector.shape_cast %331 : vector<1x1x8x1xf32> to vector<8x1xf32>
    %cst_147 = arith.constant 0.000000e+00 : f32
    %333 = vector.broadcast %cst_147 : f32 to vector<8x1xf32>
    %334 = arith.cmpf one, %332, %333 : vector<8x1xf32>
    %335 = vector.shape_cast %334 : vector<8x1xi1> to vector<8x1xi1>
    %336 = vector.broadcast %335 : vector<8x1xi1> to vector<8x128xi1>
    %337 = arith.select %336, %329, %289 : vector<8x128xi1>, vector<8x128xf32>
    %c7_i32_148 = arith.constant 7 : i32
    %c0_149 = arith.constant 0 : index
    %c0_150 = arith.constant 0 : index
    %c0_151 = arith.constant 0 : index
    %338 = vector.load %arg7[%c0_149, %c0_150, %c0_151] : memref<1x8x128xf32, #tpu.memory_space<vmem>>, vector<1x8x128xf32>
    %339 = vector.shape_cast %338 : vector<1x8x128xf32> to vector<8x128xf32>
    %340 = vector.shape_cast %337 : vector<8x128xf32> to vector<1x8x128xf32>
    tpu.vector_store %arg7[%c0_149, %c0_150, %c0_151], %340 {strides = array<i32>} : memref<1x8x128xf32, #tpu.memory_space<vmem>>, vector<1x8x128xf32>,
    return
  }
  func.func @transform_0(%arg0: i32) -> (i32, i32, i32, i32) {
    %c0_i32 = arith.constant 0 : i32
    %c0_i32_0 = arith.constant 0 : i32
    %c0_i32_1 = arith.constant 0 : i32
    %c0_i32_2 = arith.constant 0 : i32
    return %arg0, %c0_i32, %c0_i32_0, %c0_i32_1 : i32, i32, i32, i32
  }
  func.func @transform_1(%arg0: i32) -> (i32, i32) {
    %c0_i32 = arith.constant 0 : i32
    %c0_i32_0 = arith.constant 0 : i32
    %c0_i32_1 = arith.constant 0 : i32
    return %c0_i32, %c0_i32_0 : i32, i32
  }
  func.func @transform_2(%arg0: i32) -> (i32, i32) {
    %c0_i32 = arith.constant 0 : i32
    %c0_i32_0 = arith.constant 0 : i32
    %c0_i32_1 = arith.constant 0 : i32
    return %c0_i32, %c0_i32_0 : i32, i32
  }
  func.func @transform_3(%arg0: i32) -> (i32, i32) {
    %c0_i32 = arith.constant 0 : i32
    %c0_i32_0 = arith.constant 0 : i32
    %c0_i32_1 = arith.constant 0 : i32
    return %c0_i32, %c0_i32_0 : i32, i32
  }
  func.func @transform_4(%arg0: i32) -> (i32, i32) {
    %c0_i32 = arith.constant 0 : i32
    %c0_i32_0 = arith.constant 0 : i32
    %c0_i32_1 = arith.constant 0 : i32
    return %c0_i32, %c0_i32_0 : i32, i32
  }
  func.func @transform_5(%arg0: i32) -> (i32, i32, i32, i32) {
    %c0_i32 = arith.constant 0 : i32
    %c0_i32_0 = arith.constant 0 : i32
    %c0_i32_1 = arith.constant 0 : i32
    %c0_i32_2 = arith.constant 0 : i32
    return %arg0, %c0_i32, %c0_i32_0, %c0_i32_1 : i32, i32, i32, i32
  }
  func.func @transform_6(%arg0: i32) -> (i32, i32, i32) {
    %c0_i32 = arith.constant 0 : i32
    %c0_i32_0 = arith.constant 0 : i32
    %c0_i32_1 = arith.constant 0 : i32
    return %arg0, %c0_i32, %c0_i32_0 : i32, i32, i32
  }
}

</mosaic_0001>

<llo_original>
// kernel: _lambda_.1
$region0: #{_lambda_.1}
  #allocation0 [shape = 'u32[]', space=smem, size = 0x4, offset = 0x4, fixed_abs, tag = 'smem constant byte address 0x4 - core index']
  #allocation1 [shape = 'u32[144,128]{1,0:T(1,128)}', space=vmem, size = 0x12000, scoped, tag = 'internal scratch']
  %s0 = inlined_call_operand.vmem [shape: f32[1,8,8,384], index: 0, kind: input, shape index: {}]
  %s1 = inlined_call_operand.vmem [shape: bf16[128,128], index: 1, kind: input, shape index: {}]
  %s2 = inlined_call_operand.vmem [shape: f32[8,128], index: 2, kind: input, shape index: {}]
  %s3 = inlined_call_operand.vmem [shape: bf16[128,384], index: 3, kind: input, shape index: {}]
  %s4 = inlined_call_operand.vmem [shape: bf16[128,384], index: 4, kind: input, shape index: {}]
  %s5 = inlined_call_operand.vmem [shape: f32[1,8,8,1], index: 5, kind: input, shape index: {}]
  %s6 = inlined_call_operand.vmem [shape: f32[1,8,128], index: 6, kind: output, shape index: {}]
  %s7 = sld [smem:[#allocation0]]
  $region34: #{_lambda_.1} parent=0
    _
  %s9 = ssub.s32 1, %s7
  %s10 = scalar_select 0, %s9, %s7
  // Predicated region
  $region2: #{_lambda_.1} parent=0 // pred_check
    _
  $region3: #{_lambda_.1} parent=0 // pred_check_branch
    %12 = sbr.rel (0) target = $region5
  $region4: #{_lambda_.1} parent=0 // pred_region
    _
  $region5: #{_lambda_.1} parent=0 // pred_fallthru
    _
  // Predicated region
  $region6: #{_lambda_.1} parent=0 // pred_check
    _
  $region7: #{_lambda_.1} parent=0 // pred_check_branch
    %14 = sbr.rel (0) target = $region9
  $region8: #{_lambda_.1} parent=0 // pred_region
    _
  $region9: #{_lambda_.1} parent=0 // pred_fallthru
    _
  // Predicated region
  $region10: #{_lambda_.1} parent=0 // pred_check
    _
  $region11: #{_lambda_.1} parent=0 // pred_check_branch
    %16 = sbr.rel (0) target = $region13
  $region12: #{_lambda_.1} parent=0 // pred_region
    _
  $region13: #{_lambda_.1} parent=0 // pred_fallthru
    _
  // Predicated region
  $region14: #{_lambda_.1} parent=0 // pred_check
    _
  $region15: #{_lambda_.1} parent=0 // pred_check_branch
    %18 = sbr.rel (0) target = $region17
  $region16: #{_lambda_.1} parent=0 // pred_region
    _
  $region17: #{_lambda_.1} parent=0 // pred_fallthru
    _
  // Predicated region
  $region18: #{_lambda_.1} parent=0 // pred_check
    _
  $region19: #{_lambda_.1} parent=0 // pred_check_branch
    %20 = sbr.rel (0) target = $region21
  $region20: #{_lambda_.1} parent=0 // pred_region
    _
  $region21: #{_lambda_.1} parent=0 // pred_fallthru
    _
  // Predicated region
  $region22: #{_lambda_.1} parent=0 // pred_check
    _
  $region23: #{_lambda_.1} parent=0 // pred_check_branch
    %22 = sbr.rel (0) target = $region25
  $region24: #{_lambda_.1} parent=0 // pred_region
    _
  $region25: #{_lambda_.1} parent=0 // pred_fallthru
    _
  %v24 = vld [vmem:[%s0 + $0x10] sm:$0xff]
  %s25 = scalar_lea.vmem %s0, 24
  %v26 = vld [vmem:[%s25] sm:$0xff]
  %v27 = vld [vmem:[%s25 + $0x8] sm:$0xff]
  %v28 = vld [vmem:[%s25 + $0x10] sm:$0xff]
  %v29 = vpack.c.bf16 %v24, %v24
  %v30 = vld [vmem:[%s4] sm:$0xff]
  %v31 = vld [vmem:[%s4 + $0x8] sm:$0xf]
  %v32 = vld [vmem:[%s4 + $0xc] sm:$0xff]
  %v33 = vld [vmem:[%s4 + $0x14] sm:$0xf]
  %v34 = vld [vmem:[%s4 + $0x18] sm:$0xff]
  %v35 = vld [vmem:[%s4 + $0x20] sm:$0xf]
  %v36 = vld [vmem:[%s4 + $0x24] sm:$0xff]
  %v37 = vld [vmem:[%s4 + $0x2c] sm:$0xf]
  %v38 = vld [vmem:[%s4 + $0x30] sm:$0xff]
  %v39 = vld [vmem:[%s4 + $0x38] sm:$0xf]
  %v40 = vld [vmem:[%s4 + $0x3c] sm:$0xff]
  %v41 = vld [vmem:[%s4 + $0x44] sm:$0xf]
  %v42 = vld [vmem:[%s4 + $0x48] sm:$0xff]
  %v43 = vld [vmem:[%s4 + $0x50] sm:$0xf]
  %v44 = vld [vmem:[%s4 + $0x54] sm:$0xff]
  %v45 = vld [vmem:[%s4 + $0x5c] sm:$0xf]
  %v46 = vld [vmem:[%s4 + $0x60] sm:$0xff]
  %v47 = vld [vmem:[%s4 + $0x68] sm:$0xf]
  %v48 = vld [vmem:[%s4 + $0x6c] sm:$0xff]
  %v49 = vld [vmem:[%s4 + $0x74] sm:$0xf]
  %v50 = vld [vmem:[%s4 + $0x78] sm:$0xff]
  %v51 = vld [vmem:[%s4 + $0x80] sm:$0xf]
  %v52 = vld [vmem:[%s4 + $0x84] sm:$0xff]
  %v53 = vld [vmem:[%s4 + $0x8c] sm:$0xf]
  %v54 = vld [vmem:[%s4 + $0x90] sm:$0xff]
  %v55 = vld [vmem:[%s4 + $0x98] sm:$0xf]
  %v56 = vld [vmem:[%s4 + $0x9c] sm:$0xff]
  %v57 = vld [vmem:[%s4 + $0xa4] sm:$0xf]
  %v58 = vld [vmem:[%s4 + $0xa8] sm:$0xff]
  %v59 = vld [vmem:[%s4 + $0xb0] sm:$0xf]
  %v60 = vld [vmem:[%s4 + $0xb4] sm:$0xff]
  %v61 = vld [vmem:[%s4 + $0xbc] sm:$0xf]
  %v94 = vunpack.c.l.b16 %v30
  %v95 = vunpack.c.h.b16 %v30
  %v96 = vunpack.c.l.b16 %v31
  %v97 = vunpack.c.l.b16 %v32
  %v98 = vunpack.c.h.b16 %v32
  %v99 = vunpack.c.l.b16 %v33
  %v100 = vunpack.c.l.b16 %v34
  %v101 = vunpack.c.h.b16 %v34
  %v102 = vunpack.c.l.b16 %v35
  %v103 = vunpack.c.l.b16 %v36
  %v104 = vunpack.c.h.b16 %v36
  %v105 = vunpack.c.l.b16 %v37
  %v106 = vunpack.c.l.b16 %v38
  %v107 = vunpack.c.h.b16 %v38
  %v108 = vunpack.c.l.b16 %v39
  %v109 = vunpack.c.l.b16 %v40
  %v110 = vunpack.c.h.b16 %v40
  %v111 = vunpack.c.l.b16 %v41
  %v112 = vunpack.c.l.b16 %v42
  %v113 = vunpack.c.h.b16 %v42
  %v114 = vunpack.c.l.b16 %v43
  %v115 = vunpack.c.l.b16 %v44
  %v116 = vunpack.c.h.b16 %v44
  %v117 = vunpack.c.l.b16 %v45
  %v118 = vunpack.c.l.b16 %v46
  %v119 = vunpack.c.h.b16 %v46
  %v120 = vunpack.c.l.b16 %v47
  %v121 = vunpack.c.l.b16 %v48
  %v122 = vunpack.c.h.b16 %v48
  %v123 = vunpack.c.l.b16 %v49
  %v124 = vunpack.c.l.b16 %v50
  %v125 = vunpack.c.h.b16 %v50
  %v126 = vunpack.c.l.b16 %v51
  %v127 = vunpack.c.l.b16 %v52
  %v128 = vunpack.c.h.b16 %v52
  %v129 = vunpack.c.l.b16 %v53
  %v130 = vunpack.c.l.b16 %v54
  %v131 = vunpack.c.h.b16 %v54
  %v132 = vunpack.c.l.b16 %v55
  %v133 = vunpack.c.l.b16 %v56
  %v134 = vunpack.c.h.b16 %v56
  %v135 = vunpack.c.l.b16 %v57
  %v136 = vunpack.c.l.b16 %v58
  %v137 = vunpack.c.h.b16 %v58
  %v138 = vunpack.c.l.b16 %v59
  %v139 = vunpack.c.l.b16 %v60
  %v140 = vunpack.c.h.b16 %v60
  %v141 = vunpack.c.l.b16 %v61
  %v142 = vpack.c.b16 %v97, %v94
  %v143 = vpack.c.b16 %v98, %v95
  %v144 = vpack.c.b16 %v99, %v96
  %v145 = vpack.c.b16 %v103, %v100
  %v146 = vpack.c.b16 %v104, %v101
  %v147 = vpack.c.b16 %v105, %v102
  %v148 = vpack.c.b16 %v109, %v106
  %v149 = vpack.c.b16 %v110, %v107
  %v150 = vpack.c.b16 %v111, %v108
  %v151 = vpack.c.b16 %v115, %v112
  %v152 = vpack.c.b16 %v116, %v113
  %v153 = vpack.c.b16 %v117, %v114
  %v154 = vpack.c.b16 %v121, %v118
  %v155 = vpack.c.b16 %v122, %v119
  %v156 = vpack.c.b16 %v123, %v120
  %v157 = vpack.c.b16 %v127, %v124
  %v158 = vpack.c.b16 %v128, %v125
  %v159 = vpack.c.b16 %v129, %v126
  %v160 = vpack.c.b16 %v133, %v130
  %v161 = vpack.c.b16 %v134, %v131
  %v162 = vpack.c.b16 %v135, %v132
  %v163 = vpack.c.b16 %v139, %v136
  %v164 = vpack.c.b16 %v140, %v137
  %v165 = vpack.c.b16 %v141, %v138
  %190 = vmatprep.subr.bf16.mxu0 %v143
  %191 = vmatpush1.bf16.msra.mxu0 %v142
  %192 = vmatprep.subr.bf16.mxu0 %v146
  %193 = vmatpush1.bf16.msra.mxu0 %v145
  %194 = vmatprep.subr.bf16.mxu0 %v149
  %195 = vmatpush1.bf16.msra.mxu0 %v148
  %196 = vmatprep.subr.bf16.mxu0 %v152
  %197 = vmatpush1.bf16.msra.mxu0 %v151
  %198 = vmatprep.subr.bf16.mxu0 %v155
  %199 = vmatpush1.bf16.msra.mxu0 %v154
  %200 = vmatprep.subr.bf16.mxu0 %v158
  %201 = vmatpush1.bf16.msra.mxu0 %v157
  %202 = vmatprep.subr.bf16.mxu0 %v161
  %203 = vmatpush1.bf16.msra.mxu0 %v160
  %204 = vmatprep.subr.bf16.mxu0 %v164
  %205 = vmatpush1.bf16.msra.mxu0 %v163
  %206 = vmatprep.subr.bf16.mxu0 0
  %207 = vmatpush1.bf16.msra.mxu0 0
  %208 = vmatprep.subr.bf16.mxu0 0
  %209 = vmatpush1.bf16.msra.mxu0 0
  %210 = vmatprep.subr.bf16.mxu0 0
  %211 = vmatpush1.bf16.msra.mxu0 0
  %212 = vmatprep.subr.bf16.mxu0 0
  %213 = vmatpush1.bf16.msra.mxu0 0
  %214 = vmatprep.subr.bf16.mxu0 0
  %215 = vmatpush1.bf16.msra.mxu0 0
  %216 = vmatprep.subr.bf16.mxu0 0
  %217 = vmatpush1.bf16.msra.mxu0 0
  %218 = vmatprep.subr.bf16.mxu0 0
  %219 = vmatpush1.bf16.msra.mxu0 0
  %220 = vmatprep.subr.bf16.mxu0 0
  %221 = vmatpush1.bf16.msra.mxu0 0
  %222 = vmatprep.mubr.bf16.mxu0 0
  %223 = vmatmul.mubr.bf16.gmra.mrb[0].mxu0 %v29
  %v224 = vpop.f32.mrb[0].mxu0
  %v225 = vadd.f32 0.0, %v224
  %v226 = vpop.f32.mrb[0].mxu0
  %v227 = vadd.f32 0.0, %v226
  %v228 = vpop.f32.mrb[0].mxu0
  %v229 = vpop.f32.mrb[0].mxu0
  %230 = vdwg.mxu0
  %231 = vmatprep.subr.bf16.mxu0 0
  %232 = vmatpush1.bf16.msra.mxu0 %v144
  %233 = vmatprep.subr.bf16.mxu0 0
  %234 = vmatpush1.bf16.msra.mxu0 %v147
  %235 = vmatprep.subr.bf16.mxu0 0
  %236 = vmatpush1.bf16.msra.mxu0 %v150
  %237 = vmatprep.subr.bf16.mxu0 0
  %238 = vmatpush1.bf16.msra.mxu0 %v153
  %239 = vmatprep.subr.bf16.mxu0 0
  %240 = vmatpush1.bf16.msra.mxu0 %v156
  %241 = vmatprep.subr.bf16.mxu0 0
  %242 = vmatpush1.bf16.msra.mxu0 %v159
  %243 = vmatprep.subr.bf16.mxu0 0
  %244 = vmatpush1.bf16.msra.mxu0 %v162
  %245 = vmatprep.subr.bf16.mxu0 0
  %246 = vmatpush1.bf16.msra.mxu0 %v165
  %247 = vmatprep.subr.bf16.mxu0 0
  %248 = vmatpush1.bf16.msra.mxu0 0
  %249 = vmatprep.subr.bf16.mxu0 0
  %250 = vmatpush1.bf16.msra.mxu0 0
  %251 = vmatprep.subr.bf16.mxu0 0
  %252 = vmatpush1.bf16.msra.mxu0 0
  %253 = vmatprep.subr.bf16.mxu0 0
  %254 = vmatpush1.bf16.msra.mxu0 0
  %255 = vmatprep.subr.bf16.mxu0 0
  %256 = vmatpush1.bf16.msra.mxu0 0
  %257 = vmatprep.subr.bf16.mxu0 0
  %258 = vmatpush1.bf16.msra.mxu0 0
  %259 = vmatprep.subr.bf16.mxu0 0
  %260 = vmatpush1.bf16.msra.mxu0 0
  %261 = vmatprep.subr.bf16.mxu0 0
  %262 = vmatpush1.bf16.msra.mxu0 0
  %263 = vmatprep.mubr.bf16.mxu0 0
  %264 = vmatmul.mubr.bf16.gmra.mrb[0].mxu0 %v29
  %v265 = vpop.f32.mrb[0].mxu0
  %v266 = vadd.f32 0.0, %v265
  %v267 = vpop.f32.mrb[0].mxu0
  %v268 = vpop.f32.mrb[0].mxu0
  %v269 = vpop.f32.mrb[0].mxu0
  %270 = vdwg.mxu0
  %v271 = vld [vmem:[%s1] sm:$0xf]
  %v272 = vld [vmem:[%s1 + $0x4] sm:$0xf]
  %v273 = vld [vmem:[%s1 + $0x8] sm:$0xf]
  %v274 = vld [vmem:[%s1 + $0xc] sm:$0xf]
  %v275 = vld [vmem:[%s1 + $0x10] sm:$0xf]
  %v276 = vld [vmem:[%s1 + $0x14] sm:$0xf]
  %v277 = vld [vmem:[%s1 + $0x18] sm:$0xf]
  %v278 = vld [vmem:[%s1 + $0x1c] sm:$0xf]
  %v279 = vld [vmem:[%s1 + $0x20] sm:$0xf]
  %v280 = vld [vmem:[%s1 + $0x24] sm:$0xf]
  %v281 = vld [vmem:[%s1 + $0x28] sm:$0xf]
  %v282 = vld [vmem:[%s1 + $0x2c] sm:$0xf]
  %v283 = vld [vmem:[%s1 + $0x30] sm:$0xf]
  %v284 = vld [vmem:[%s1 + $0x34] sm:$0xf]
  %v285 = vld [vmem:[%s1 + $0x38] sm:$0xf]
  %v286 = vld [vmem:[%s1 + $0x3c] sm:$0xf]
  %v287 = vld [vmem:[%s2] sm:$0xff]
  %v304 = vunpack.c.l.b16 %v271
  %v305 = vunpack.c.l.b16 %v272
  %v306 = vunpack.c.l.b16 %v273
  %v307 = vunpack.c.l.b16 %v274
  %v308 = vunpack.c.l.b16 %v275
  %v309 = vunpack.c.l.b16 %v276
  %v310 = vunpack.c.l.b16 %v277
  %v311 = vunpack.c.l.b16 %v278
  %v312 = vunpack.c.l.b16 %v279
  %v313 = vunpack.c.l.b16 %v280
  %v314 = vunpack.c.l.b16 %v281
  %v315 = vunpack.c.l.b16 %v282
  %v316 = vunpack.c.l.b16 %v283
  %v317 = vunpack.c.l.b16 %v284
  %v318 = vunpack.c.l.b16 %v285
  %v319 = vunpack.c.l.b16 %v286
  %v320 = vpack.c.b16 %v305, %v304
  %v321 = vpack.c.b16 %v307, %v306
  %v322 = vpack.c.b16 %v309, %v308
  %v323 = vpack.c.b16 %v311, %v310
  %v324 = vpack.c.b16 %v313, %v312
  %v325 = vpack.c.b16 %v315, %v314
  %v326 = vpack.c.b16 %v317, %v316
  %v327 = vpack.c.b16 %v319, %v318
  %336 = vmatprep.subr.bf16.mxu0 0
  %337 = vmatpush1.bf16.msra.mxu0 %v320
  %338 = vmatprep.subr.bf16.mxu0 0
  %339 = vmatpush1.bf16.msra.mxu0 %v321
  %340 = vmatprep.subr.bf16.mxu0 0
  %341 = vmatpush1.bf16.msra.mxu0 %v322
  %342 = vmatprep.subr.bf16.mxu0 0
  %343 = vmatpush1.bf16.msra.mxu0 %v323
  %344 = vmatprep.subr.bf16.mxu0 0
  %345 = vmatpush1.bf16.msra.mxu0 %v324
  %346 = vmatprep.subr.bf16.mxu0 0
  %347 = vmatpush1.bf16.msra.mxu0 %v325
  %348 = vmatprep.subr.bf16.mxu0 0
  %349 = vmatpush1.bf16.msra.mxu0 %v326
  %350 = vmatprep.subr.bf16.mxu0 0
  %351 = vmatpush1.bf16.msra.mxu0 %v327
  %352 = vmatprep.subr.bf16.mxu0 0
  %353 = vmatpush1.bf16.msra.mxu0 0
  %354 = vmatprep.subr.bf16.mxu0 0
  %355 = vmatpush1.bf16.msra.mxu0 0
  %356 = vmatprep.subr.bf16.mxu0 0
  %357 = vmatpush1.bf16.msra.mxu0 0
  %358 = vmatprep.subr.bf16.mxu0 0
  %359 = vmatpush1.bf16.msra.mxu0 0
  %360 = vmatprep.subr.bf16.mxu0 0
  %361 = vmatpush1.bf16.msra.mxu0 0
  %362 = vmatprep.subr.bf16.mxu0 0
  %363 = vmatpush1.bf16.msra.mxu0 0
  %364 = vmatprep.subr.bf16.mxu0 0
  %365 = vmatpush1.bf16.msra.mxu0 0
  %366 = vmatprep.subr.bf16.mxu0 0
  %367 = vmatpush1.bf16.msra.mxu0 0
  %368 = vmatprep.mubr.bf16.mxu0 0
  %369 = vmatmul.mubr.bf16.gmra.mrb[0].mxu0 %v29
  %v370 = vpop.f32.mrb[0].mxu0
  %v371 = vadd.f32 %v287, %v370
  %v372 = vpop.f32.mrb[0].mxu0
  %v373 = vpop.f32.mrb[0].mxu0
  %v374 = vpop.f32.mrb[0].mxu0
  %375 = vdwg.mxu0
  %v376 = vmul.f32 %v371, 1.442695
  %v377 = vpow.pop %v376
  %378 = vadd.xlane.f32.xlu0 %v377
  %v379 = vpop.xlane.xlu0 %378
  %v380 = vrcp.pop %v379
  %v381 = vmul.f32 %v377, %v380
  %v382 = vpack.c.bf16 %v381, %v381
  %v383 = vld [vmem:[%s3] sm:$0xff]
  %v384 = vld [vmem:[%s3 + $0x8] sm:$0xf]
  %v385 = vld [vmem:[%s3 + $0xc] sm:$0xff]
  %v386 = vld [vmem:[%s3 + $0x14] sm:$0xf]
  %v387 = vld [vmem:[%s3 + $0x18] sm:$0xff]
  %v388 = vld [vmem:[%s3 + $0x20] sm:$0xf]
  %v389 = vld [vmem:[%s3 + $0x24] sm:$0xff]
  %v390 = vld [vmem:[%s3 + $0x2c] sm:$0xf]
  %v391 = vld [vmem:[%s3 + $0x30] sm:$0xff]
  %v392 = vld [vmem:[%s3 + $0x38] sm:$0xf]
  %v393 = vld [vmem:[%s3 + $0x3c] sm:$0xff]
  %v394 = vld [vmem:[%s3 + $0x44] sm:$0xf]
  %v395 = vld [vmem:[%s3 + $0x48] sm:$0xff]
  %v396 = vld [vmem:[%s3 + $0x50] sm:$0xf]
  %v397 = vld [vmem:[%s3 + $0x54] sm:$0xff]
  %v398 = vld [vmem:[%s3 + $0x5c] sm:$0xf]
  %v399 = vld [vmem:[%s3 + $0x60] sm:$0xff]
  %v400 = vld [vmem:[%s3 + $0x68] sm:$0xf]
  %v401 = vld [vmem:[%s3 + $0x6c] sm:$0xff]
  %v402 = vld [vmem:[%s3 + $0x74] sm:$0xf]
  %v403 = vld [vmem:[%s3 + $0x78] sm:$0xff]
  %v404 = vld [vmem:[%s3 + $0x80] sm:$0xf]
  %v405 = vld [vmem:[%s3 + $0x84] sm:$0xff]
  %v406 = vld [vmem:[%s3 + $0x8c] sm:$0xf]
  %v407 = vld [vmem:[%s3 + $0x90] sm:$0xff]
  %v408 = vld [vmem:[%s3 + $0x98] sm:$0xf]
  %v409 = vld [vmem:[%s3 + $0x9c] sm:$0xff]
  %v410 = vld [vmem:[%s3 + $0xa4] sm:$0xf]
  %v411 = vld [vmem:[%s3 + $0xa8] sm:$0xff]
  %v412 = vld [vmem:[%s3 + $0xb0] sm:$0xf]
  %v413 = vld [vmem:[%s3 + $0xb4] sm:$0xff]
  %v414 = vld [vmem:[%s3 + $0xbc] sm:$0xf]
  %v447 = vunpack.c.l.b16 %v383
  %v448 = vunpack.c.h.b16 %v383
  %v449 = vunpack.c.l.b16 %v384
  %v450 = vunpack.c.l.b16 %v385
  %v451 = vunpack.c.h.b16 %v385
  %v452 = vunpack.c.l.b16 %v386
  %v453 = vunpack.c.l.b16 %v387
  %v454 = vunpack.c.h.b16 %v387
  %v455 = vunpack.c.l.b16 %v388
  %v456 = vunpack.c.l.b16 %v389
  %v457 = vunpack.c.h.b16 %v389
  %v458 = vunpack.c.l.b16 %v390
  %v459 = vunpack.c.l.b16 %v391
  %v460 = vunpack.c.h.b16 %v391
  %v461 = vunpack.c.l.b16 %v392
  %v462 = vunpack.c.l.b16 %v393
  %v463 = vunpack.c.h.b16 %v393
  %v464 = vunpack.c.l.b16 %v394
  %v465 = vunpack.c.l.b16 %v395
  %v466 = vunpack.c.h.b16 %v395
  %v467 = vunpack.c.l.b16 %v396
  %v468 = vunpack.c.l.b16 %v397
  %v469 = vunpack.c.h.b16 %v397
  %v470 = vunpack.c.l.b16 %v398
  %v471 = vunpack.c.l.b16 %v399
  %v472 = vunpack.c.h.b16 %v399
  %v473 = vunpack.c.l.b16 %v400
  %v474 = vunpack.c.l.b16 %v401
  %v475 = vunpack.c.h.b16 %v401
  %v476 = vunpack.c.l.b16 %v402
  %v477 = vunpack.c.l.b16 %v403
  %v478 = vunpack.c.h.b16 %v403
  %v479 = vunpack.c.l.b16 %v404
  %v480 = vunpack.c.l.b16 %v405
  %v481 = vunpack.c.h.b16 %v405
  %v482 = vunpack.c.l.b16 %v406
  %v483 = vunpack.c.l.b16 %v407
  %v484 = vunpack.c.h.b16 %v407
  %v485 = vunpack.c.l.b16 %v408
  %v486 = vunpack.c.l.b16 %v409
  %v487 = vunpack.c.h.b16 %v409
  %v488 = vunpack.c.l.b16 %v410
  %v489 = vunpack.c.l.b16 %v411
  %v490 = vunpack.c.h.b16 %v411
  %v491 = vunpack.c.l.b16 %v412
  %v492 = vunpack.c.l.b16 %v413
  %v493 = vunpack.c.h.b16 %v413
  %v494 = vunpack.c.l.b16 %v414
  %v495 = vpack.c.b16 %v450, %v447
  %v496 = vpack.c.b16 %v451, %v448
  %v497 = vpack.c.b16 %v452, %v449
  %v498 = vpack.c.b16 %v456, %v453
  %v499 = vpack.c.b16 %v457, %v454
  %v500 = vpack.c.b16 %v458, %v455
  %v501 = vpack.c.b16 %v462, %v459
  %v502 = vpack.c.b16 %v463, %v460
  %v503 = vpack.c.b16 %v464, %v461
  %v504 = vpack.c.b16 %v468, %v465
  %v505 = vpack.c.b16 %v469, %v466
  %v506 = vpack.c.b16 %v470, %v467
  %v507 = vpack.c.b16 %v474, %v471
  %v508 = vpack.c.b16 %v475, %v472
  %v509 = vpack.c.b16 %v476, %v473
  %v510 = vpack.c.b16 %v480, %v477
  %v511 = vpack.c.b16 %v481, %v478
  %v512 = vpack.c.b16 %v482, %v479
  %v513 = vpack.c.b16 %v486, %v483
  %v514 = vpack.c.b16 %v487, %v484
  %v515 = vpack.c.b16 %v488, %v485
  %v516 = vpack.c.b16 %v492, %v489
  %v517 = vpack.c.b16 %v493, %v490
  %v518 = vpack.c.b16 %v494, %v491
  %543 = vmatprep.subr.bf16.mxu0 %v496
  %544 = vmatpush1.bf16.msra.mxu0 %v495
  %545 = vmatprep.subr.bf16.mxu0 %v499
  %546 = vmatpush1.bf16.msra.mxu0 %v498
  %547 = vmatprep.subr.bf16.mxu0 %v502
  %548 = vmatpush1.bf16.msra.mxu0 %v501
  %549 = vmatprep.subr.bf16.mxu0 %v505
  %550 = vmatpush1.bf16.msra.mxu0 %v504
  %551 = vmatprep.subr.bf16.mxu0 %v508
  %552 = vmatpush1.bf16.msra.mxu0 %v507
  %553 = vmatprep.subr.bf16.mxu0 %v511
  %554 = vmatpush1.bf16.msra.mxu0 %v510
  %555 = vmatprep.subr.bf16.mxu0 %v514
  %556 = vmatpush1.bf16.msra.mxu0 %v513
  %557 = vmatprep.subr.bf16.mxu0 %v517
  %558 = vmatpush1.bf16.msra.mxu0 %v516
  %559 = vmatprep.subr.bf16.mxu0 0
  %560 = vmatpush1.bf16.msra.mxu0 0
  %561 = vmatprep.subr.bf16.mxu0 0
  %562 = vmatpush1.bf16.msra.mxu0 0
  %563 = vmatprep.subr.bf16.mxu0 0
  %564 = vmatpush1.bf16.msra.mxu0 0
  %565 = vmatprep.subr.bf16.mxu0 0
  %566 = vmatpush1.bf16.msra.mxu0 0
  %567 = vmatprep.subr.bf16.mxu0 0
  %568 = vmatpush1.bf16.msra.mxu0 0
  %569 = vmatprep.subr.bf16.mxu0 0
  %570 = vmatpush1.bf16.msra.mxu0 0
  %571 = vmatprep.subr.bf16.mxu0 0
  %572 = vmatpush1.bf16.msra.mxu0 0
  %573 = vmatprep.subr.bf16.mxu0 0
  %574 = vmatpush1.bf16.msra.mxu0 0
  %575 = vmatprep.mubr.bf16.mxu0 0
  %576 = vmatmul.mubr.bf16.gmra.mrb[0].mxu0 %v382
  %v577 = vpop.f32.mrb[0].mxu0
  %v578 = vadd.f32 0.0, %v577
  %v579 = vpop.f32.mrb[0].mxu0
  %v580 = vadd.f32 0.0, %v579
  %v581 = vpop.f32.mrb[0].mxu0
  %v582 = vpop.f32.mrb[0].mxu0
  %583 = vdwg.mxu0
  %584 = vmatprep.subr.bf16.mxu0 0
  %585 = vmatpush1.bf16.msra.mxu0 %v497
  %586 = vmatprep.subr.bf16.mxu0 0
  %587 = vmatpush1.bf16.msra.mxu0 %v500
  %588 = vmatprep.subr.bf16.mxu0 0
  %589 = vmatpush1.bf16.msra.mxu0 %v503
  %590 = vmatprep.subr.bf16.mxu0 0
  %591 = vmatpush1.bf16.msra.mxu0 %v506
  %592 = vmatprep.subr.bf16.mxu0 0
  %593 = vmatpush1.bf16.msra.mxu0 %v509
  %594 = vmatprep.subr.bf16.mxu0 0
  %595 = vmatpush1.bf16.msra.mxu0 %v512
  %596 = vmatprep.subr.bf16.mxu0 0
  %597 = vmatpush1.bf16.msra.mxu0 %v515
  %598 = vmatprep.subr.bf16.mxu0 0
  %599 = vmatpush1.bf16.msra.mxu0 %v518
  %600 = vmatprep.subr.bf16.mxu0 0
  %601 = vmatpush1.bf16.msra.mxu0 0
  %602 = vmatprep.subr.bf16.mxu0 0
  %603 = vmatpush1.bf16.msra.mxu0 0
  %604 = vmatprep.subr.bf16.mxu0 0
  %605 = vmatpush1.bf16.msra.mxu0 0
  %606 = vmatprep.subr.bf16.mxu0 0
  %607 = vmatpush1.bf16.msra.mxu0 0
  %608 = vmatprep.subr.bf16.mxu0 0
  %609 = vmatpush1.bf16.msra.mxu0 0
  %610 = vmatprep.subr.bf16.mxu0 0
  %611 = vmatpush1.bf16.msra.mxu0 0
  %612 = vmatprep.subr.bf16.mxu0 0
  %613 = vmatpush1.bf16.msra.mxu0 0
  %614 = vmatprep.subr.bf16.mxu0 0
  %615 = vmatpush1.bf16.msra.mxu0 0
  %616 = vmatprep.mubr.bf16.mxu0 0
  %617 = vmatmul.mubr.bf16.gmra.mrb[0].mxu0 %v382
  %v618 = vpop.f32.mrb[0].mxu0
  %v619 = vadd.f32 0.0, %v618
  %v620 = vpop.f32.mrb[0].mxu0
  %v621 = vpop.f32.mrb[0].mxu0
  %v622 = vpop.f32.mrb[0].mxu0
  %623 = vdwg.mxu0
  %v624 = vadd.f32 %v26, %v578
  %v625 = vadd.f32 %v27, %v580
  %v626 = vadd.f32 %v28, %v619
  %v627 = vadd.f32 %v624, %v225
  %v628 = vadd.f32 %v625, %v227
  %v629 = vxor.u32 %v627, 2147483648
  %v630 = vxor.u32 %v628, 2147483648
  %v631 = vmul.f32 %v629, 1.442695
  %v632 = vpow.pop %v631
  %v633 = vmul.f32 %v630, 1.442695
  %v634 = vpow.pop %v633
  %v635 = vadd.f32 %v632, 1.0
  %v636 = vadd.f32 %v634, 1.0
  %v637 = vrcp.pop %v635
  %v638 = vmul.f32 1.0, %v637
  %v639 = vrcp.pop %v636
  %v640 = vmul.f32 1.0, %v639
  %v641 = vmul.f32 %v638, %v266
  %v642 = vadd.f32 %v626, %v641
  %v643 = vtanh.pop %v642
  %v644 = vsub.f32 1.0, %v640
  %v645 = vmul.f32 %v644, %v643
  %v646 = vmul.f32 %v640, %v24
  %v647 = vadd.f32 %v645, %v646
  %s648 = scalar_lea.vmem %s5, 8
  %v649 = vld [vmem:[%s648] sm:$0xff]
  %vm650 = vcmp.ne.f32.partialorder %v649, 0.0
  %v651 = vsel %vm650, 1, 0
  %652 = vset.pattern.permute.xlu0 0
  %653 = vperm.xlu0 %652, %v651
  %v654 = vpop.permute.xlu0 %653
  %vm655 = vcmp.eq.s32.totalorder %v654, 1
  %v656 = vsel %vm655, %v647, %v24
  %s657 = scalar_lea.vmem %s0, 48
  %v658 = vld [vmem:[%s657] sm:$0xff]
  %v659 = vld [vmem:[%s657 + $0x8] sm:$0xff]
  %v660 = vld [vmem:[%s657 + $0x10] sm:$0xff]
  %v661 = vpack.c.bf16 %v656, %v656
  %662 = vmatprep.subr.bf16.mxu0 %v143
  %663 = vmatpush1.bf16.msra.mxu0 %v142
  %664 = vmatprep.subr.bf16.mxu0 %v146
  %665 = vmatpush1.bf16.msra.mxu0 %v145
  %666 = vmatprep.subr.bf16.mxu0 %v149
  %667 = vmatpush1.bf16.msra.mxu0 %v148
  %668 = vmatprep.subr.bf16.mxu0 %v152
  %669 = vmatpush1.bf16.msra.mxu0 %v151
  %670 = vmatprep.subr.bf16.mxu0 %v155
  %671 = vmatpush1.bf16.msra.mxu0 %v154
  %672 = vmatprep.subr.bf16.mxu0 %v158
  %673 = vmatpush1.bf16.msra.mxu0 %v157
  %674 = vmatprep.subr.bf16.mxu0 %v161
  %675 = vmatpush1.bf16.msra.mxu0 %v160
  %676 = vmatprep.subr.bf16.mxu0 %v164
  %677 = vmatpush1.bf16.msra.mxu0 %v163
  %678 = vmatprep.subr.bf16.mxu0 0
  %679 = vmatpush1.bf16.msra.mxu0 0
  %680 = vmatprep.subr.bf16.mxu0 0
  %681 = vmatpush1.bf16.msra.mxu0 0
  %682 = vmatprep.subr.bf16.mxu0 0
  %683 = vmatpush1.bf16.msra.mxu0 0
  %684 = vmatprep.subr.bf16.mxu0 0
  %685 = vmatpush1.bf16.msra.mxu0 0
  %686 = vmatprep.subr.bf16.mxu0 0
  %687 = vmatpush1.bf16.msra.mxu0 0
  %688 = vmatprep.subr.bf16.mxu0 0
  %689 = vmatpush1.bf16.msra.mxu0 0
  %690 = vmatprep.subr.bf16.mxu0 0
  %691 = vmatpush1.bf16.msra.mxu0 0
  %692 = vmatprep.subr.bf16.mxu0 0
  %693 = vmatpush1.bf16.msra.mxu0 0
  %694 = vmatprep.mubr.bf16.mxu0 0
  %695 = vmatmul.mubr.bf16.gmra.mrb[0].mxu0 %v661
  %v696 = vpop.f32.mrb[0].mxu0
  %v697 = vadd.f32 0.0, %v696
  %v698 = vpop.f32.mrb[0].mxu0
  %v699 = vadd.f32 0.0, %v698
  %v700 = vpop.f32.mrb[0].mxu0
  %v701 = vpop.f32.mrb[0].mxu0
  %702 = vdwg.mxu0
  %703 = vmatprep.subr.bf16.mxu0 0
  %704 = vmatpush1.bf16.msra.mxu0 %v144
  %705 = vmatprep.subr.bf16.mxu0 0
  %706 = vmatpush1.bf16.msra.mxu0 %v147
  %707 = vmatprep.subr.bf16.mxu0 0
  %708 = vmatpush1.bf16.msra.mxu0 %v150
  %709 = vmatprep.subr.bf16.mxu0 0
  %710 = vmatpush1.bf16.msra.mxu0 %v153
  %711 = vmatprep.subr.bf16.mxu0 0
  %712 = vmatpush1.bf16.msra.mxu0 %v156
  %713 = vmatprep.subr.bf16.mxu0 0
  %714 = vmatpush1.bf16.msra.mxu0 %v159
  %715 = vmatprep.subr.bf16.mxu0 0
  %716 = vmatpush1.bf16.msra.mxu0 %v162
  %717 = vmatprep.subr.bf16.mxu0 0
  %718 = vmatpush1.bf16.msra.mxu0 %v165
  %719 = vmatprep.subr.bf16.mxu0 0
  %720 = vmatpush1.bf16.msra.mxu0 0
  %721 = vmatprep.subr.bf16.mxu0 0
  %722 = vmatpush1.bf16.msra.mxu0 0
  %723 = vmatprep.subr.bf16.mxu0 0
  %724 = vmatpush1.bf16.msra.mxu0 0
  %725 = vmatprep.subr.bf16.mxu0 0
  %726 = vmatpush1.bf16.msra.mxu0 0
  %727 = vmatprep.subr.bf16.mxu0 0
  %728 = vmatpush1.bf16.msra.mxu0 0
  %729 = vmatprep.subr.bf16.mxu0 0
  %730 = vmatpush1.bf16.msra.mxu0 0
  %731 = vmatprep.subr.bf16.mxu0 0
  %732 = vmatpush1.bf16.msra.mxu0 0
  %733 = vmatprep.subr.bf16.mxu0 0
  %734 = vmatpush1.bf16.msra.mxu0 0
  %735 = vmatprep.mubr.bf16.mxu0 0
  %736 = vmatmul.mubr.bf16.gmra.mrb[0].mxu0 %v661
  %v737 = vpop.f32.mrb[0].mxu0
  %v738 = vadd.f32 0.0, %v737
  %v739 = vpop.f32.mrb[0].mxu0
  %v740 = vpop.f32.mrb[0].mxu0
  %v741 = vpop.f32.mrb[0].mxu0
  %742 = vdwg.mxu0
  %743 = vmatprep.subr.bf16.mxu0 0
  %744 = vmatpush1.bf16.msra.mxu0 %v320
  %745 = vmatprep.subr.bf16.mxu0 0
  %746 = vmatpush1.bf16.msra.mxu0 %v321
  %747 = vmatprep.subr.bf16.mxu0 0
  %748 = vmatpush1.bf16.msra.mxu0 %v322
  %749 = vmatprep.subr.bf16.mxu0 0
  %750 = vmatpush1.bf16.msra.mxu0 %v323
  %751 = vmatprep.subr.bf16.mxu0 0
  %752 = vmatpush1.bf16.msra.mxu0 %v324
  %753 = vmatprep.subr.bf16.mxu0 0
  %754 = vmatpush1.bf16.msra.mxu0 %v325
  %755 = vmatprep.subr.bf16.mxu0 0
  %756 = vmatpush1.bf16.msra.mxu0 %v326
  %757 = vmatprep.subr.bf16.mxu0 0
  %758 = vmatpush1.bf16.msra.mxu0 %v327
  %759 = vmatprep.subr.bf16.mxu0 0
  %760 = vmatpush1.bf16.msra.mxu0 0
  %761 = vmatprep.subr.bf16.mxu0 0
  %762 = vmatpush1.bf16.msra.mxu0 0
  %763 = vmatprep.subr.bf16.mxu0 0
  %764 = vmatpush1.bf16.msra.mxu0 0
  %765 = vmatprep.subr.bf16.mxu0 0
  %766 = vmatpush1.bf16.msra.mxu0 0
  %767 = vmatprep.subr.bf16.mxu0 0
  %768 = vmatpush1.bf16.msra.mxu0 0
  %769 = vmatprep.subr.bf16.mxu0 0
  %770 = vmatpush1.bf16.msra.mxu0 0
  %771 = vmatprep.subr.bf16.mxu0 0
  %772 = vmatpush1.bf16.msra.mxu0 0
  %773 = vmatprep.subr.bf16.mxu0 0
  %774 = vmatpush1.bf16.msra.mxu0 0
  %775 = vmatprep.mubr.bf16.mxu0 0
  %776 = vmatmul.mubr.bf16.gmra.mrb[0].mxu0 %v661
  %v777 = vpop.f32.mrb[0].mxu0
  %v778 = vadd.f32 %v287, %v777
  %v779 = vpop.f32.mrb[0].mxu0
  %v780 = vpop.f32.mrb[0].mxu0
  %v781 = vpop.f32.mrb[0].mxu0
  %782 = vdwg.mxu0
  %v783 = vmul.f32 %v778, 1.442695
  %v784 = vpow.pop %v783
  %785 = vadd.xlane.f32.xlu0 %v784
  %v786 = vpop.xlane.xlu0 %785
  %v787 = vrcp.pop %v786
  %v788 = vmul.f32 %v784, %v787
  %v789 = vpack.c.bf16 %v788, %v788
  %790 = vmatprep.subr.bf16.mxu0 %v496
  %791 = vmatpush1.bf16.msra.mxu0 %v495
  %792 = vmatprep.subr.bf16.mxu0 %v499
  %793 = vmatpush1.bf16.msra.mxu0 %v498
  %794 = vmatprep.subr.bf16.mxu0 %v502
  %795 = vmatpush1.bf16.msra.mxu0 %v501
  %796 = vmatprep.subr.bf16.mxu0 %v505
  %797 = vmatpush1.bf16.msra.mxu0 %v504
  %798 = vmatprep.subr.bf16.mxu0 %v508
  %799 = vmatpush1.bf16.msra.mxu0 %v507
  %800 = vmatprep.subr.bf16.mxu0 %v511
  %801 = vmatpush1.bf16.msra.mxu0 %v510
  %802 = vmatprep.subr.bf16.mxu0 %v514
  %803 = vmatpush1.bf16.msra.mxu0 %v513
  %804 = vmatprep.subr.bf16.mxu0 %v517
  %805 = vmatpush1.bf16.msra.mxu0 %v516
  %806 = vmatprep.subr.bf16.mxu0 0
  %807 = vmatpush1.bf16.msra.mxu0 0
  %808 = vmatprep.subr.bf16.mxu0 0
  %809 = vmatpush1.bf16.msra.mxu0 0
  %810 = vmatprep.subr.bf16.mxu0 0
  %811 = vmatpush1.bf16.msra.mxu0 0
  %812 = vmatprep.subr.bf16.mxu0 0
  %813 = vmatpush1.bf16.msra.mxu0 0
  %814 = vmatprep.subr.bf16.mxu0 0
  %815 = vmatpush1.bf16.msra.mxu0 0
  %816 = vmatprep.subr.bf16.mxu0 0
  %817 = vmatpush1.bf16.msra.mxu0 0
  %818 = vmatprep.subr.bf16.mxu0 0
  %819 = vmatpush1.bf16.msra.mxu0 0
  %820 = vmatprep.subr.bf16.mxu0 0
  %821 = vmatpush1.bf16.msra.mxu0 0
  %822 = vmatprep.mubr.bf16.mxu0 0
  %823 = vmatmul.mubr.bf16.gmra.mrb[0].mxu0 %v789
  %v824 = vpop.f32.mrb[0].mxu0
  %v825 = vadd.f32 0.0, %v824
  %v826 = vpop.f32.mrb[0].mxu0
  %v827 = vadd.f32 0.0, %v826
  %v828 = vpop.f32.mrb[0].mxu0
  %v829 = vpop.f32.mrb[0].mxu0
  %830 = vdwg.mxu0
  %831 = vmatprep.subr.bf16.mxu0 0
  %832 = vmatpush1.bf16.msra.mxu0 %v497
  %833 = vmatprep.subr.bf16.mxu0 0
  %834 = vmatpush1.bf16.msra.mxu0 %v500
  %835 = vmatprep.subr.bf16.mxu0 0
  %836 = vmatpush1.bf16.msra.mxu0 %v503
  %837 = vmatprep.subr.bf16.mxu0 0
  %838 = vmatpush1.bf16.msra.mxu0 %v506
  %839 = vmatprep.subr.bf16.mxu0 0
  %840 = vmatpush1.bf16.msra.mxu0 %v509
  %841 = vmatprep.subr.bf16.mxu0 0
  %842 = vmatpush1.bf16.msra.mxu0 %v512
  %843 = vmatprep.subr.bf16.mxu0 0
  %844 = vmatpush1.bf16.msra.mxu0 %v515
  %845 = vmatprep.subr.bf16.mxu0 0
  %846 = vmatpush1.bf16.msra.mxu0 %v518
  %847 = vmatprep.subr.bf16.mxu0 0
  %848 = vmatpush1.bf16.msra.mxu0 0
  %849 = vmatprep.subr.bf16.mxu0 0
  %850 = vmatpush1.bf16.msra.mxu0 0
  %851 = vmatprep.subr.bf16.mxu0 0
  %852 = vmatpush1.bf16.msra.mxu0 0
  %853 = vmatprep.subr.bf16.mxu0 0
  %854 = vmatpush1.bf16.msra.mxu0 0
  %855 = vmatprep.subr.bf16.mxu0 0
  %856 = vmatpush1.bf16.msra.mxu0 0
  %857 = vmatprep.subr.bf16.mxu0 0
  %858 = vmatpush1.bf16.msra.mxu0 0
  %859 = vmatprep.subr.bf16.mxu0 0
  %860 = vmatpush1.bf16.msra.mxu0 0
  %861 = vmatprep.subr.bf16.mxu0 0
  %862 = vmatpush1.bf16.msra.mxu0 0
  %863 = vmatprep.mubr.bf16.mxu0 0
  %864 = vmatmul.mubr.bf16.gmra.mrb[0].mxu0 %v789
  %v865 = vpop.f32.mrb[0].mxu0
  %v866 = vadd.f32 0.0, %v865
  %v867 = vpop.f32.mrb[0].mxu0
  %v868 = vpop.f32.mrb[0].mxu0
  %v869 = vpop.f32.mrb[0].mxu0
  %870 = vdwg.mxu0
  %v871 = vadd.f32 %v658, %v825
  %v872 = vadd.f32 %v659, %v827
  %v873 = vadd.f32 %v660, %v866
  %v874 = vadd.f32 %v871, %v697
  %v875 = vadd.f32 %v872, %v699
  %v876 = vxor.u32 %v874, 2147483648
  %v877 = vxor.u32 %v875, 2147483648
  %v878 = vmul.f32 %v876, 1.442695
  %v879 = vpow.pop %v878
  %v880 = vmul.f32 %v877, 1.442695
  %v881 = vpow.pop %v880
  %v882 = vadd.f32 %v879, 1.0
  %v883 = vadd.f32 %v881, 1.0
  %v884 = vrcp.pop %v882
  %v885 = vmul.f32 1.0, %v884
  %v886 = vrcp.pop %v883
  %v887 = vmul.f32 1.0, %v886
  %v888 = vmul.f32 %v885, %v738
  %v889 = vadd.f32 %v873, %v888
  %v890 = vtanh.pop %v889
  %v891 = vsub.f32 1.0, %v887
  %v892 = vmul.f32 %v891, %v890
  %v893 = vmul.f32 %v887, %v656
  %v894 = vadd.f32 %v892, %v893
  %s895 = scalar_lea.vmem %s5, 16
  %v896 = vld [vmem:[%s895] sm:$0xff]
  %vm897 = vcmp.ne.f32.partialorder %v896, 0.0
  %v898 = vsel %vm897, 1, 0
  %899 = vset.pattern.permute.xlu0 0
  %900 = vperm.xlu0 %899, %v898
  %v901 = vpop.permute.xlu0 %900
  %vm902 = vcmp.eq.s32.totalorder %v901, 1
  %v903 = vsel %vm902, %v894, %v656
  %s904 = scalar_lea.vmem %s0, 72
  %v905 = vld [vmem:[%s904] sm:$0xff]
  %v906 = vld [vmem:[%s904 + $0x8] sm:$0xff]
  %v907 = vld [vmem:[%s904 + $0x10] sm:$0xff]
  %v908 = vpack.c.bf16 %v903, %v903
  %909 = vmatprep.subr.bf16.mxu0 %v143
  %910 = vmatpush1.bf16.msra.mxu0 %v142
  %911 = vmatprep.subr.bf16.mxu0 %v146
  %912 = vmatpush1.bf16.msra.mxu0 %v145
  %913 = vmatprep.subr.bf16.mxu0 %v149
  %914 = vmatpush1.bf16.msra.mxu0 %v148
  %915 = vmatprep.subr.bf16.mxu0 %v152
  %916 = vmatpush1.bf16.msra.mxu0 %v151
  %917 = vmatprep.subr.bf16.mxu0 %v155
  %918 = vmatpush1.bf16.msra.mxu0 %v154
  %919 = vmatprep.subr.bf16.mxu0 %v158
  %920 = vmatpush1.bf16.msra.mxu0 %v157
  %921 = vmatprep.subr.bf16.mxu0 %v161
  %922 = vmatpush1.bf16.msra.mxu0 %v160
  %923 = vmatprep.subr.bf16.mxu0 %v164
  %924 = vmatpush1.bf16.msra.mxu0 %v163
  %925 = vmatprep.subr.bf16.mxu0 0
  %926 = vmatpush1.bf16.msra.mxu0 0
  %927 = vmatprep.subr.bf16.mxu0 0
  %928 = vmatpush1.bf16.msra.mxu0 0
  %929 = vmatprep.subr.bf16.mxu0 0
  %930 = vmatpush1.bf16.msra.mxu0 0
  %931 = vmatprep.subr.bf16.mxu0 0
  %932 = vmatpush1.bf16.msra.mxu0 0
  %933 = vmatprep.subr.bf16.mxu0 0
  %934 = vmatpush1.bf16.msra.mxu0 0
  %935 = vmatprep.subr.bf16.mxu0 0
  %936 = vmatpush1.bf16.msra.mxu0 0
  %937 = vmatprep.subr.bf16.mxu0 0
  %938 = vmatpush1.bf16.msra.mxu0 0
  %939 = vmatprep.subr.bf16.mxu0 0
  %940 = vmatpush1.bf16.msra.mxu0 0
  %941 = vmatprep.mubr.bf16.mxu0 0
  %942 = vmatmul.mubr.bf16.gmra.mrb[0].mxu0 %v908
  %v943 = vpop.f32.mrb[0].mxu0
  %v944 = vadd.f32 0.0, %v943
  %v945 = vpop.f32.mrb[0].mxu0
  %v946 = vadd.f32 0.0, %v945
  %v947 = vpop.f32.mrb[0].mxu0
  %v948 = vpop.f32.mrb[0].mxu0
  %949 = vdwg.mxu0
  %950 = vmatprep.subr.bf16.mxu0 0
  %951 = vmatpush1.bf16.msra.mxu0 %v144
  %952 = vmatprep.subr.bf16.mxu0 0
  %953 = vmatpush1.bf16.msra.mxu0 %v147
  %954 = vmatprep.subr.bf16.mxu0 0
  %955 = vmatpush1.bf16.msra.mxu0 %v150
  %956 = vmatprep.subr.bf16.mxu0 0
  %957 = vmatpush1.bf16.msra.mxu0 %v153
  %958 = vmatprep.subr.bf16.mxu0 0
  %959 = vmatpush1.bf16.msra.mxu0 %v156
  %960 = vmatprep.subr.bf16.mxu0 0
  %961 = vmatpush1.bf16.msra.mxu0 %v159
  %962 = vmatprep.subr.bf16.mxu0 0
  %963 = vmatpush1.bf16.msra.mxu0 %v162
  %964 = vmatprep.subr.bf16.mxu0 0
  %965 = vmatpush1.bf16.msra.mxu0 %v165
  %966 = vmatprep.subr.bf16.mxu0 0
  %967 = vmatpush1.bf16.msra.mxu0 0
  %968 = vmatprep.subr.bf16.mxu0 0
  %969 = vmatpush1.bf16.msra.mxu0 0
  %970 = vmatprep.subr.bf16.mxu0 0
  %971 = vmatpush1.bf16.msra.mxu0 0
  %972 = vmatprep.subr.bf16.mxu0 0
  %973 = vmatpush1.bf16.msra.mxu0 0
  %974 = vmatprep.subr.bf16.mxu0 0
  %975 = vmatpush1.bf16.msra.mxu0 0
  %976 = vmatprep.subr.bf16.mxu0 0
  %977 = vmatpush1.bf16.msra.mxu0 0
  %978 = vmatprep.subr.bf16.mxu0 0
  %979 = vmatpush1.bf16.msra.mxu0 0
  %980 = vmatprep.subr.bf16.mxu0 0
  %981 = vmatpush1.bf16.msra.mxu0 0
  %982 = vmatprep.mubr.bf16.mxu0 0
  %983 = vmatmul.mubr.bf16.gmra.mrb[0].mxu0 %v908
  %v984 = vpop.f32.mrb[0].mxu0
  %v985 = vadd.f32 0.0, %v984
  %v986 = vpop.f32.mrb[0].mxu0
  %v987 = vpop.f32.mrb[0].mxu0
  %v988 = vpop.f32.mrb[0].mxu0
  %989 = vdwg.mxu0
  %990 = vmatprep.subr.bf16.mxu0 0
  %991 = vmatpush1.bf16.msra.mxu0 %v320
  %992 = vmatprep.subr.bf16.mxu0 0
  %993 = vmatpush1.bf16.msra.mxu0 %v321
  %994 = vmatprep.subr.bf16.mxu0 0
  %995 = vmatpush1.bf16.msra.mxu0 %v322
  %996 = vmatprep.subr.bf16.mxu0 0
  %997 = vmatpush1.bf16.msra.mxu0 %v323
  %998 = vmatprep.subr.bf16.mxu0 0
  %999 = vmatpush1.bf16.msra.mxu0 %v324
  %1000 = vmatprep.subr.bf16.mxu0 0
  %1001 = vmatpush1.bf16.msra.mxu0 %v325
  %1002 = vmatprep.subr.bf16.mxu0 0
  %1003 = vmatpush1.bf16.msra.mxu0 %v326
  %1004 = vmatprep.subr.bf16.mxu0 0
  %1005 = vmatpush1.bf16.msra.mxu0 %v327
  %1006 = vmatprep.subr.bf16.mxu0 0
  %1007 = vmatpush1.bf16.msra.mxu0 0
  %1008 = vmatprep.subr.bf16.mxu0 0
  %1009 = vmatpush1.bf16.msra.mxu0 0
  %1010 = vmatprep.subr.bf16.mxu0 0
  %1011 = vmatpush1.bf16.msra.mxu0 0
  %1012 = vmatprep.subr.bf16.mxu0 0
  %1013 = vmatpush1.bf16.msra.mxu0 0
  %1014 = vmatprep.subr.bf16.mxu0 0
  %1015 = vmatpush1.bf16.msra.mxu0 0
  %1016 = vmatprep.subr.bf16.mxu0 0
  %1017 = vmatpush1.bf16.msra.mxu0 0
  %1018 = vmatprep.subr.bf16.mxu0 0
  %1019 = vmatpush1.bf16.msra.mxu0 0
  %1020 = vmatprep.subr.bf16.mxu0 0
  %1021 = vmatpush1.bf16.msra.mxu0 0
  %1022 = vmatprep.mubr.bf16.mxu0 0
  %1023 = vmatmul.mubr.bf16.gmra.mrb[0].mxu0 %v908
  %v1024 = vpop.f32.mrb[0].mxu0
  %v1025 = vadd.f32 %v287, %v1024
  %v1026 = vpop.f32.mrb[0].mxu0
  %v1027 = vpop.f32.mrb[0].mxu0
  %v1028 = vpop.f32.mrb[0].mxu0
  %1029 = vdwg.mxu0
  %v1030 = vmul.f32 %v1025, 1.442695
  %v1031 = vpow.pop %v1030
  %1032 = vadd.xlane.f32.xlu0 %v1031
  %v1033 = vpop.xlane.xlu0 %1032
  %v1034 = vrcp.pop %v1033
  %v1035 = vmul.f32 %v1031, %v1034
  %v1036 = vpack.c.bf16 %v1035, %v1035
  %1037 = vmatprep.subr.bf16.mxu0 %v496
  %1038 = vmatpush1.bf16.msra.mxu0 %v495
  %1039 = vmatprep.subr.bf16.mxu0 %v499
  %1040 = vmatpush1.bf16.msra.mxu0 %v498
  %1041 = vmatprep.subr.bf16.mxu0 %v502
  %1042 = vmatpush1.bf16.msra.mxu0 %v501
  %1043 = vmatprep.subr.bf16.mxu0 %v505
  %1044 = vmatpush1.bf16.msra.mxu0 %v504
  %1045 = vmatprep.subr.bf16.mxu0 %v508
  %1046 = vmatpush1.bf16.msra.mxu0 %v507
  %1047 = vmatprep.subr.bf16.mxu0 %v511
  %1048 = vmatpush1.bf16.msra.mxu0 %v510
  %1049 = vmatprep.subr.bf16.mxu0 %v514
  %1050 = vmatpush1.bf16.msra.mxu0 %v513
  %1051 = vmatprep.subr.bf16.mxu0 %v517
  %1052 = vmatpush1.bf16.msra.mxu0 %v516
  %1053 = vmatprep.subr.bf16.mxu0 0
  %1054 = vmatpush1.bf16.msra.mxu0 0
  %1055 = vmatprep.subr.bf16.mxu0 0
  %1056 = vmatpush1.bf16.msra.mxu0 0
  %1057 = vmatprep.subr.bf16.mxu0 0
  %1058 = vmatpush1.bf16.msra.mxu0 0
  %1059 = vmatprep.subr.bf16.mxu0 0
  %1060 = vmatpush1.bf16.msra.mxu0 0
  %1061 = vmatprep.subr.bf16.mxu0 0
  %1062 = vmatpush1.bf16.msra.mxu0 0
  %1063 = vmatprep.subr.bf16.mxu0 0
  %1064 = vmatpush1.bf16.msra.mxu0 0
  %1065 = vmatprep.subr.bf16.mxu0 0
  %1066 = vmatpush1.bf16.msra.mxu0 0
  %1067 = vmatprep.subr.bf16.mxu0 0
  %1068 = vmatpush1.bf16.msra.mxu0 0
  %1069 = vmatprep.mubr.bf16.mxu0 0
  %1070 = vmatmul.mubr.bf16.gmra.mrb[0].mxu0 %v1036
  %v1071 = vpop.f32.mrb[0].mxu0
  %v1072 = vadd.f32 0.0, %v1071
  %v1073 = vpop.f32.mrb[0].mxu0
  %v1074 = vadd.f32 0.0, %v1073
  %v1075 = vpop.f32.mrb[0].mxu0
  %v1076 = vpop.f32.mrb[0].mxu0
  %1077 = vdwg.mxu0
  %1078 = vmatprep.subr.bf16.mxu0 0
  %1079 = vmatpush1.bf16.msra.mxu0 %v497
  %1080 = vmatprep.subr.bf16.mxu0 0
  %1081 = vmatpush1.bf16.msra.mxu0 %v500
  %1082 = vmatprep.subr.bf16.mxu0 0
  %1083 = vmatpush1.bf16.msra.mxu0 %v503
  %1084 = vmatprep.subr.bf16.mxu0 0
  %1085 = vmatpush1.bf16.msra.mxu0 %v506
  %1086 = vmatprep.subr.bf16.mxu0 0
  %1087 = vmatpush1.bf16.msra.mxu0 %v509
  %1088 = vmatprep.subr.bf16.mxu0 0
  %1089 = vmatpush1.bf16.msra.mxu0 %v512
  %1090 = vmatprep.subr.bf16.mxu0 0
  %1091 = vmatpush1.bf16.msra.mxu0 %v515
  %1092 = vmatprep.subr.bf16.mxu0 0
  %1093 = vmatpush1.bf16.msra.mxu0 %v518
  %1094 = vmatprep.subr.bf16.mxu0 0
  %1095 = vmatpush1.bf16.msra.mxu0 0
  %1096 = vmatprep.subr.bf16.mxu0 0
  %1097 = vmatpush1.bf16.msra.mxu0 0
  %1098 = vmatprep.subr.bf16.mxu0 0
  %1099 = vmatpush1.bf16.msra.mxu0 0
  %1100 = vmatprep.subr.bf16.mxu0 0
  %1101 = vmatpush1.bf16.msra.mxu0 0
  %1102 = vmatprep.subr.bf16.mxu0 0
  %1103 = vmatpush1.bf16.msra.mxu0 0
  %1104 = vmatprep.subr.bf16.mxu0 0
  %1105 = vmatpush1.bf16.msra.mxu0 0
  %1106 = vmatprep.subr.bf16.mxu0 0
  %1107 = vmatpush1.bf16.msra.mxu0 0
  %1108 = vmatprep.subr.bf16.mxu0 0
  %1109 = vmatpush1.bf16.msra.mxu0 0
  %1110 = vmatprep.mubr.bf16.mxu0 0
  %1111 = vmatmul.mubr.bf16.gmra.mrb[0].mxu0 %v1036
  %v1112 = vpop.f32.mrb[0].mxu0
  %v1113 = vadd.f32 0.0, %v1112
  %v1114 = vpop.f32.mrb[0].mxu0
  %v1115 = vpop.f32.mrb[0].mxu0
  %v1116 = vpop.f32.mrb[0].mxu0
  %1117 = vdwg.mxu0
  %v1118 = vadd.f32 %v905, %v1072
  %v1119 = vadd.f32 %v906, %v1074
  %v1120 = vadd.f32 %v907, %v1113
  %v1121 = vadd.f32 %v1118, %v944
  %v1122 = vadd.f32 %v1119, %v946
  %v1123 = vxor.u32 %v1121, 2147483648
  %v1124 = vxor.u32 %v1122, 2147483648
  %v1125 = vmul.f32 %v1123, 1.442695
  %v1126 = vpow.pop %v1125
  %v1127 = vmul.f32 %v1124, 1.442695
  %v1128 = vpow.pop %v1127
  %v1129 = vadd.f32 %v1126, 1.0
  %v1130 = vadd.f32 %v1128, 1.0
  %v1131 = vrcp.pop %v1129
  %v1132 = vmul.f32 1.0, %v1131
  %v1133 = vrcp.pop %v1130
  %v1134 = vmul.f32 1.0, %v1133
  %v1135 = vmul.f32 %v1132, %v985
  %v1136 = vadd.f32 %v1120, %v1135
  %v1137 = vtanh.pop %v1136
  %v1138 = vsub.f32 1.0, %v1134
  %v1139 = vmul.f32 %v1138, %v1137
  %v1140 = vmul.f32 %v1134, %v903
  %v1141 = vadd.f32 %v1139, %v1140
  %s1142 = scalar_lea.vmem %s5, 24
  %v1143 = vld [vmem:[%s1142] sm:$0xff]
  %vm1144 = vcmp.ne.f32.partialorder %v1143, 0.0
  %v1145 = vsel %vm1144, 1, 0
  %1146 = vset.pattern.permute.xlu0 0
  %1147 = vperm.xlu0 %1146, %v1145
  %v1148 = vpop.permute.xlu0 %1147
  %vm1149 = vcmp.eq.s32.totalorder %v1148, 1
  %v1150 = vsel %vm1149, %v1141, %v903
  %s1151 = scalar_lea.vmem %s0, 96
  %v1152 = vld [vmem:[%s1151] sm:$0xff]
  %v1153 = vld [vmem:[%s1151 + $0x8] sm:$0xff]
  %v1154 = vld [vmem:[%s1151 + $0x10] sm:$0xff]
  %v1155 = vpack.c.bf16 %v1150, %v1150
  %1156 = vmatprep.subr.bf16.mxu0 %v143
  %1157 = vmatpush1.bf16.msra.mxu0 %v142
  %1158 = vmatprep.subr.bf16.mxu0 %v146
  %1159 = vmatpush1.bf16.msra.mxu0 %v145
  %1160 = vmatprep.subr.bf16.mxu0 %v149
  %1161 = vmatpush1.bf16.msra.mxu0 %v148
  %1162 = vmatprep.subr.bf16.mxu0 %v152
  %1163 = vmatpush1.bf16.msra.mxu0 %v151
  %1164 = vmatprep.subr.bf16.mxu0 %v155
  %1165 = vmatpush1.bf16.msra.mxu0 %v154
  %1166 = vmatprep.subr.bf16.mxu0 %v158
  %1167 = vmatpush1.bf16.msra.mxu0 %v157
  %1168 = vmatprep.subr.bf16.mxu0 %v161
  %1169 = vmatpush1.bf16.msra.mxu0 %v160
  %1170 = vmatprep.subr.bf16.mxu0 %v164
  %1171 = vmatpush1.bf16.msra.mxu0 %v163
  %1172 = vmatprep.subr.bf16.mxu0 0
  %1173 = vmatpush1.bf16.msra.mxu0 0
  %1174 = vmatprep.subr.bf16.mxu0 0
  %1175 = vmatpush1.bf16.msra.mxu0 0
  %1176 = vmatprep.subr.bf16.mxu0 0
  %1177 = vmatpush1.bf16.msra.mxu0 0
  %1178 = vmatprep.subr.bf16.mxu0 0
  %1179 = vmatpush1.bf16.msra.mxu0 0
  %1180 = vmatprep.subr.bf16.mxu0 0
  %1181 = vmatpush1.bf16.msra.mxu0 0
  %1182 = vmatprep.subr.bf16.mxu0 0
  %1183 = vmatpush1.bf16.msra.mxu0 0
  %1184 = vmatprep.subr.bf16.mxu0 0
  %1185 = vmatpush1.bf16.msra.mxu0 0
  %1186 = vmatprep.subr.bf16.mxu0 0
  %1187 = vmatpush1.bf16.msra.mxu0 0
  %1188 = vmatprep.mubr.bf16.mxu0 0
  %1189 = vmatmul.mubr.bf16.gmra.mrb[0].mxu0 %v1155
  %v1190 = vpop.f32.mrb[0].mxu0
  %v1191 = vadd.f32 0.0, %v1190
  %v1192 = vpop.f32.mrb[0].mxu0
  %v1193 = vadd.f32 0.0, %v1192
  %v1194 = vpop.f32.mrb[0].mxu0
  %v1195 = vpop.f32.mrb[0].mxu0
  %1196 = vdwg.mxu0
  %1197 = vmatprep.subr.bf16.mxu0 0
  %1198 = vmatpush1.bf16.msra.mxu0 %v144
  %1199 = vmatprep.subr.bf16.mxu0 0
  %1200 = vmatpush1.bf16.msra.mxu0 %v147
  %1201 = vmatprep.subr.bf16.mxu0 0
  %1202 = vmatpush1.bf16.msra.mxu0 %v150
  %1203 = vmatprep.subr.bf16.mxu0 0
  %1204 = vmatpush1.bf16.msra.mxu0 %v153
  %1205 = vmatprep.subr.bf16.mxu0 0
  %1206 = vmatpush1.bf16.msra.mxu0 %v156
  %1207 = vmatprep.subr.bf16.mxu0 0
  %1208 = vmatpush1.bf16.msra.mxu0 %v159
  %1209 = vmatprep.subr.bf16.mxu0 0
  %1210 = vmatpush1.bf16.msra.mxu0 %v162
  %1211 = vmatprep.subr.bf16.mxu0 0
  %1212 = vmatpush1.bf16.msra.mxu0 %v165
  %1213 = vmatprep.subr.bf16.mxu0 0
  %1214 = vmatpush1.bf16.msra.mxu0 0
  %1215 = vmatprep.subr.bf16.mxu0 0
  %1216 = vmatpush1.bf16.msra.mxu0 0
  %1217 = vmatprep.subr.bf16.mxu0 0
  %1218 = vmatpush1.bf16.msra.mxu0 0
  %1219 = vmatprep.subr.bf16.mxu0 0
  %1220 = vmatpush1.bf16.msra.mxu0 0
  %1221 = vmatprep.subr.bf16.mxu0 0
  %1222 = vmatpush1.bf16.msra.mxu0 0
  %1223 = vmatprep.subr.bf16.mxu0 0
  %1224 = vmatpush1.bf16.msra.mxu0 0
  %1225 = vmatprep.subr.bf16.mxu0 0
  %1226 = vmatpush1.bf16.msra.mxu0 0
  %1227 = vmatprep.subr.bf16.mxu0 0
  %1228 = vmatpush1.bf16.msra.mxu0 0
  %1229 = vmatprep.mubr.bf16.mxu0 0
  %1230 = vmatmul.mubr.bf16.gmra.mrb[0].mxu0 %v1155
  %v1231 = vpop.f32.mrb[0].mxu0
  %v1232 = vadd.f32 0.0, %v1231
  %v1233 = vpop.f32.mrb[0].mxu0
  %v1234 = vpop.f32.mrb[0].mxu0
  %v1235 = vpop.f32.mrb[0].mxu0
  %1236 = vdwg.mxu0
  %1237 = vmatprep.subr.bf16.mxu0 0
  %1238 = vmatpush1.bf16.msra.mxu0 %v320
  %1239 = vmatprep.subr.bf16.mxu0 0
  %1240 = vmatpush1.bf16.msra.mxu0 %v321
  %1241 = vmatprep.subr.bf16.mxu0 0
  %1242 = vmatpush1.bf16.msra.mxu0 %v322
  %1243 = vmatprep.subr.bf16.mxu0 0
  %1244 = vmatpush1.bf16.msra.mxu0 %v323
  %1245 = vmatprep.subr.bf16.mxu0 0
  %1246 = vmatpush1.bf16.msra.mxu0 %v324
  %1247 = vmatprep.subr.bf16.mxu0 0
  %1248 = vmatpush1.bf16.msra.mxu0 %v325
  %1249 = vmatprep.subr.bf16.mxu0 0
  %1250 = vmatpush1.bf16.msra.mxu0 %v326
  %1251 = vmatprep.subr.bf16.mxu0 0
  %1252 = vmatpush1.bf16.msra.mxu0 %v327
  %1253 = vmatprep.subr.bf16.mxu0 0
  %1254 = vmatpush1.bf16.msra.mxu0 0
  %1255 = vmatprep.subr.bf16.mxu0 0
  %1256 = vmatpush1.bf16.msra.mxu0 0
  %1257 = vmatprep.subr.bf16.mxu0 0
  %1258 = vmatpush1.bf16.msra.mxu0 0
  %1259 = vmatprep.subr.bf16.mxu0 0
  %1260 = vmatpush1.bf16.msra.mxu0 0
  %1261 = vmatprep.subr.bf16.mxu0 0
  %1262 = vmatpush1.bf16.msra.mxu0 0
  %1263 = vmatprep.subr.bf16.mxu0 0
  %1264 = vmatpush1.bf16.msra.mxu0 0
  %1265 = vmatprep.subr.bf16.mxu0 0
  %1266 = vmatpush1.bf16.msra.mxu0 0
  %1267 = vmatprep.subr.bf16.mxu0 0
  %1268 = vmatpush1.bf16.msra.mxu0 0
  %1269 = vmatprep.mubr.bf16.mxu0 0
  %1270 = vmatmul.mubr.bf16.gmra.mrb[0].mxu0 %v1155
  %v1271 = vpop.f32.mrb[0].mxu0
  %v1272 = vadd.f32 %v287, %v1271
  %v1273 = vpop.f32.mrb[0].mxu0
  %v1274 = vpop.f32.mrb[0].mxu0
  %v1275 = vpop.f32.mrb[0].mxu0
  %1276 = vdwg.mxu0
  %v1277 = vmul.f32 %v1272, 1.442695
  %v1278 = vpow.pop %v1277
  %1279 = vadd.xlane.f32.xlu0 %v1278
  %v1280 = vpop.xlane.xlu0 %1279
  %v1281 = vrcp.pop %v1280
  %v1282 = vmul.f32 %v1278, %v1281
  %v1283 = vpack.c.bf16 %v1282, %v1282
  %1284 = vmatprep.subr.bf16.mxu0 %v496
  %1285 = vmatpush1.bf16.msra.mxu0 %v495
  %1286 = vmatprep.subr.bf16.mxu0 %v499
  %1287 = vmatpush1.bf16.msra.mxu0 %v498
  %1288 = vmatprep.subr.bf16.mxu0 %v502
  %1289 = vmatpush1.bf16.msra.mxu0 %v501
  %1290 = vmatprep.subr.bf16.mxu0 %v505
  %1291 = vmatpush1.bf16.msra.mxu0 %v504
  %1292 = vmatprep.subr.bf16.mxu0 %v508
  %1293 = vmatpush1.bf16.msra.mxu0 %v507
  %1294 = vmatprep.subr.bf16.mxu0 %v511
  %1295 = vmatpush1.bf16.msra.mxu0 %v510
  %1296 = vmatprep.subr.bf16.mxu0 %v514
  %1297 = vmatpush1.bf16.msra.mxu0 %v513
  %1298 = vmatprep.subr.bf16.mxu0 %v517
  %1299 = vmatpush1.bf16.msra.mxu0 %v516
  %1300 = vmatprep.subr.bf16.mxu0 0
  %1301 = vmatpush1.bf16.msra.mxu0 0
  %1302 = vmatprep.subr.bf16.mxu0 0
  %1303 = vmatpush1.bf16.msra.mxu0 0
  %1304 = vmatprep.subr.bf16.mxu0 0
  %1305 = vmatpush1.bf16.msra.mxu0 0
  %1306 = vmatprep.subr.bf16.mxu0 0
  %1307 = vmatpush1.bf16.msra.mxu0 0
  %1308 = vmatprep.subr.bf16.mxu0 0
  %1309 = vmatpush1.bf16.msra.mxu0 0
  %1310 = vmatprep.subr.bf16.mxu0 0
  %1311 = vmatpush1.bf16.msra.mxu0 0
  %1312 = vmatprep.subr.bf16.mxu0 0
  %1313 = vmatpush1.bf16.msra.mxu0 0
  %1314 = vmatprep.subr.bf16.mxu0 0
  %1315 = vmatpush1.bf16.msra.mxu0 0
  %1316 = vmatprep.mubr.bf16.mxu0 0
  %1317 = vmatmul.mubr.bf16.gmra.mrb[0].mxu0 %v1283
  %v1318 = vpop.f32.mrb[0].mxu0
  %v1319 = vadd.f32 0.0, %v1318
  %v1320 = vpop.f32.mrb[0].mxu0
  %v1321 = vadd.f32 0.0, %v1320
  %v1322 = vpop.f32.mrb[0].mxu0
  %v1323 = vpop.f32.mrb[0].mxu0
  %1324 = vdwg.mxu0
  %1325 = vmatprep.subr.bf16.mxu0 0
  %1326 = vmatpush1.bf16.msra.mxu0 %v497
  %1327 = vmatprep.subr.bf16.mxu0 0
  %1328 = vmatpush1.bf16.msra.mxu0 %v500
  %1329 = vmatprep.subr.bf16.mxu0 0
  %1330 = vmatpush1.bf16.msra.mxu0 %v503
  %1331 = vmatprep.subr.bf16.mxu0 0
  %1332 = vmatpush1.bf16.msra.mxu0 %v506
  %1333 = vmatprep.subr.bf16.mxu0 0
  %1334 = vmatpush1.bf16.msra.mxu0 %v509
  %1335 = vmatprep.subr.bf16.mxu0 0
  %1336 = vmatpush1.bf16.msra.mxu0 %v512
  %1337 = vmatprep.subr.bf16.mxu0 0
  %1338 = vmatpush1.bf16.msra.mxu0 %v515
  %1339 = vmatprep.subr.bf16.mxu0 0
  %1340 = vmatpush1.bf16.msra.mxu0 %v518
  %1341 = vmatprep.subr.bf16.mxu0 0
  %1342 = vmatpush1.bf16.msra.mxu0 0
  %1343 = vmatprep.subr.bf16.mxu0 0
  %1344 = vmatpush1.bf16.msra.mxu0 0
  %1345 = vmatprep.subr.bf16.mxu0 0
  %1346 = vmatpush1.bf16.msra.mxu0 0
  %1347 = vmatprep.subr.bf16.mxu0 0
  %1348 = vmatpush1.bf16.msra.mxu0 0
  %1349 = vmatprep.subr.bf16.mxu0 0
  %1350 = vmatpush1.bf16.msra.mxu0 0
  %1351 = vmatprep.subr.bf16.mxu0 0
  %1352 = vmatpush1.bf16.msra.mxu0 0
  %1353 = vmatprep.subr.bf16.mxu0 0
  %1354 = vmatpush1.bf16.msra.mxu0 0
  %1355 = vmatprep.subr.bf16.mxu0 0
  %1356 = vmatpush1.bf16.msra.mxu0 0
  %1357 = vmatprep.mubr.bf16.mxu0 0
  %1358 = vmatmul.mubr.bf16.gmra.mrb[0].mxu0 %v1283
  %v1359 = vpop.f32.mrb[0].mxu0
  %v1360 = vadd.f32 0.0, %v1359
  %v1361 = vpop.f32.mrb[0].mxu0
  %v1362 = vpop.f32.mrb[0].mxu0
  %v1363 = vpop.f32.mrb[0].mxu0
  %1364 = vdwg.mxu0
  %v1365 = vadd.f32 %v1152, %v1319
  %v1366 = vadd.f32 %v1153, %v1321
  %v1367 = vadd.f32 %v1154, %v1360
  %v1368 = vadd.f32 %v1365, %v1191
  %v1369 = vadd.f32 %v1366, %v1193
  %v1370 = vxor.u32 %v1368, 2147483648
  %v1371 = vxor.u32 %v1369, 2147483648
  %v1372 = vmul.f32 %v1370, 1.442695
  %v1373 = vpow.pop %v1372
  %v1374 = vmul.f32 %v1371, 1.442695
  %v1375 = vpow.pop %v1374
  %v1376 = vadd.f32 %v1373, 1.0
  %v1377 = vadd.f32 %v1375, 1.0
  %v1378 = vrcp.pop %v1376
  %v1379 = vmul.f32 1.0, %v1378
  %v1380 = vrcp.pop %v1377
  %v1381 = vmul.f32 1.0, %v1380
  %v1382 = vmul.f32 %v1379, %v1232
  %v1383 = vadd.f32 %v1367, %v1382
  %v1384 = vtanh.pop %v1383
  %v1385 = vsub.f32 1.0, %v1381
  %v1386 = vmul.f32 %v1385, %v1384
  %v1387 = vmul.f32 %v1381, %v1150
  %v1388 = vadd.f32 %v1386, %v1387
  %s1389 = scalar_lea.vmem %s5, 32
  %v1390 = vld [vmem:[%s1389] sm:$0xff]
  %vm1391 = vcmp.ne.f32.partialorder %v1390, 0.0
  %v1392 = vsel %vm1391, 1, 0
  %1393 = vset.pattern.permute.xlu0 0
  %1394 = vperm.xlu0 %1393, %v1392
  %v1395 = vpop.permute.xlu0 %1394
  %vm1396 = vcmp.eq.s32.totalorder %v1395, 1
  %v1397 = vsel %vm1396, %v1388, %v1150
  %s1398 = scalar_lea.vmem %s0, 120
  %v1399 = vld [vmem:[%s1398] sm:$0xff]
  %v1400 = vld [vmem:[%s1398 + $0x8] sm:$0xff]
  %v1401 = vld [vmem:[%s1398 + $0x10] sm:$0xff]
  %v1402 = vpack.c.bf16 %v1397, %v1397
  %1403 = vmatprep.subr.bf16.mxu0 %v143
  %1404 = vmatpush1.bf16.msra.mxu0 %v142
  %1405 = vmatprep.subr.bf16.mxu0 %v146
  %1406 = vmatpush1.bf16.msra.mxu0 %v145
  %1407 = vmatprep.subr.bf16.mxu0 %v149
  %1408 = vmatpush1.bf16.msra.mxu0 %v148
  %1409 = vmatprep.subr.bf16.mxu0 %v152
  %1410 = vmatpush1.bf16.msra.mxu0 %v151
  %1411 = vmatprep.subr.bf16.mxu0 %v155
  %1412 = vmatpush1.bf16.msra.mxu0 %v154
  %1413 = vmatprep.subr.bf16.mxu0 %v158
  %1414 = vmatpush1.bf16.msra.mxu0 %v157
  %1415 = vmatprep.subr.bf16.mxu0 %v161
  %1416 = vmatpush1.bf16.msra.mxu0 %v160
  %1417 = vmatprep.subr.bf16.mxu0 %v164
  %1418 = vmatpush1.bf16.msra.mxu0 %v163
  %1419 = vmatprep.subr.bf16.mxu0 0
  %1420 = vmatpush1.bf16.msra.mxu0 0
  %1421 = vmatprep.subr.bf16.mxu0 0
  %1422 = vmatpush1.bf16.msra.mxu0 0
  %1423 = vmatprep.subr.bf16.mxu0 0
  %1424 = vmatpush1.bf16.msra.mxu0 0
  %1425 = vmatprep.subr.bf16.mxu0 0
  %1426 = vmatpush1.bf16.msra.mxu0 0
  %1427 = vmatprep.subr.bf16.mxu0 0
  %1428 = vmatpush1.bf16.msra.mxu0 0
  %1429 = vmatprep.subr.bf16.mxu0 0
  %1430 = vmatpush1.bf16.msra.mxu0 0
  %1431 = vmatprep.subr.bf16.mxu0 0
  %1432 = vmatpush1.bf16.msra.mxu0 0
  %1433 = vmatprep.subr.bf16.mxu0 0
  %1434 = vmatpush1.bf16.msra.mxu0 0
  %1435 = vmatprep.mubr.bf16.mxu0 0
  %1436 = vmatmul.mubr.bf16.gmra.mrb[0].mxu0 %v1402
  %v1437 = vpop.f32.mrb[0].mxu0
  %v1438 = vadd.f32 0.0, %v1437
  %v1439 = vpop.f32.mrb[0].mxu0
  %v1440 = vadd.f32 0.0, %v1439
  %v1441 = vpop.f32.mrb[0].mxu0
  %v1442 = vpop.f32.mrb[0].mxu0
  %1443 = vdwg.mxu0
  %1444 = vmatprep.subr.bf16.mxu0 0
  %1445 = vmatpush1.bf16.msra.mxu0 %v144
  %1446 = vmatprep.subr.bf16.mxu0 0
  %1447 = vmatpush1.bf16.msra.mxu0 %v147
  %1448 = vmatprep.subr.bf16.mxu0 0
  %1449 = vmatpush1.bf16.msra.mxu0 %v150
  %1450 = vmatprep.subr.bf16.mxu0 0
  %1451 = vmatpush1.bf16.msra.mxu0 %v153
  %1452 = vmatprep.subr.bf16.mxu0 0
  %1453 = vmatpush1.bf16.msra.mxu0 %v156
  %1454 = vmatprep.subr.bf16.mxu0 0
  %1455 = vmatpush1.bf16.msra.mxu0 %v159
  %1456 = vmatprep.subr.bf16.mxu0 0
  %1457 = vmatpush1.bf16.msra.mxu0 %v162
  %1458 = vmatprep.subr.bf16.mxu0 0
  %1459 = vmatpush1.bf16.msra.mxu0 %v165
  %1460 = vmatprep.subr.bf16.mxu0 0
  %1461 = vmatpush1.bf16.msra.mxu0 0
  %1462 = vmatprep.subr.bf16.mxu0 0
  %1463 = vmatpush1.bf16.msra.mxu0 0
  %1464 = vmatprep.subr.bf16.mxu0 0
  %1465 = vmatpush1.bf16.msra.mxu0 0
  %1466 = vmatprep.subr.bf16.mxu0 0
  %1467 = vmatpush1.bf16.msra.mxu0 0
  %1468 = vmatprep.subr.bf16.mxu0 0
  %1469 = vmatpush1.bf16.msra.mxu0 0
  %1470 = vmatprep.subr.bf16.mxu0 0
  %1471 = vmatpush1.bf16.msra.mxu0 0
  %1472 = vmatprep.subr.bf16.mxu0 0
  %1473 = vmatpush1.bf16.msra.mxu0 0
  %1474 = vmatprep.subr.bf16.mxu0 0
  %1475 = vmatpush1.bf16.msra.mxu0 0
  %1476 = vmatprep.mubr.bf16.mxu0 0
  %1477 = vmatmul.mubr.bf16.gmra.mrb[0].mxu0 %v1402
  %v1478 = vpop.f32.mrb[0].mxu0
  %v1479 = vadd.f32 0.0, %v1478
  %v1480 = vpop.f32.mrb[0].mxu0
  %v1481 = vpop.f32.mrb[0].mxu0
  %v1482 = vpop.f32.mrb[0].mxu0
  %1483 = vdwg.mxu0
  %1484 = vmatprep.subr.bf16.mxu0 0
  %1485 = vmatpush1.bf16.msra.mxu0 %v320
  %1486 = vmatprep.subr.bf16.mxu0 0
  %1487 = vmatpush1.bf16.msra.mxu0 %v321
  %1488 = vmatprep.subr.bf16.mxu0 0
  %1489 = vmatpush1.bf16.msra.mxu0 %v322
  %1490 = vmatprep.subr.bf16.mxu0 0
  %1491 = vmatpush1.bf16.msra.mxu0 %v323
  %1492 = vmatprep.subr.bf16.mxu0 0
  %1493 = vmatpush1.bf16.msra.mxu0 %v324
  %1494 = vmatprep.subr.bf16.mxu0 0
  %1495 = vmatpush1.bf16.msra.mxu0 %v325
  %1496 = vmatprep.subr.bf16.mxu0 0
  %1497 = vmatpush1.bf16.msra.mxu0 %v326
  %1498 = vmatprep.subr.bf16.mxu0 0
  %1499 = vmatpush1.bf16.msra.mxu0 %v327
  %1500 = vmatprep.subr.bf16.mxu0 0
  %1501 = vmatpush1.bf16.msra.mxu0 0
  %1502 = vmatprep.subr.bf16.mxu0 0
  %1503 = vmatpush1.bf16.msra.mxu0 0
  %1504 = vmatprep.subr.bf16.mxu0 0
  %1505 = vmatpush1.bf16.msra.mxu0 0
  %1506 = vmatprep.subr.bf16.mxu0 0
  %1507 = vmatpush1.bf16.msra.mxu0 0
  %1508 = vmatprep.subr.bf16.mxu0 0
  %1509 = vmatpush1.bf16.msra.mxu0 0
  %1510 = vmatprep.subr.bf16.mxu0 0
  %1511 = vmatpush1.bf16.msra.mxu0 0
  %1512 = vmatprep.subr.bf16.mxu0 0
  %1513 = vmatpush1.bf16.msra.mxu0 0
  %1514 = vmatprep.subr.bf16.mxu0 0
  %1515 = vmatpush1.bf16.msra.mxu0 0
  %1516 = vmatprep.mubr.bf16.mxu0 0
  %1517 = vmatmul.mubr.bf16.gmra.mrb[0].mxu0 %v1402
  %v1518 = vpop.f32.mrb[0].mxu0
  %v1519 = vadd.f32 %v287, %v1518
  %v1520 = vpop.f32.mrb[0].mxu0
  %v1521 = vpop.f32.mrb[0].mxu0
  %v1522 = vpop.f32.mrb[0].mxu0
  %1523 = vdwg.mxu0
  %v1524 = vmul.f32 %v1519, 1.442695
  %v1525 = vpow.pop %v1524
  %1526 = vadd.xlane.f32.xlu0 %v1525
  %v1527 = vpop.xlane.xlu0 %1526
  %v1528 = vrcp.pop %v1527
  %v1529 = vmul.f32 %v1525, %v1528
  %v1530 = vpack.c.bf16 %v1529, %v1529
  %1531 = vmatprep.subr.bf16.mxu0 %v496
  %1532 = vmatpush1.bf16.msra.mxu0 %v495
  %1533 = vmatprep.subr.bf16.mxu0 %v499
  %1534 = vmatpush1.bf16.msra.mxu0 %v498
  %1535 = vmatprep.subr.bf16.mxu0 %v502
  %1536 = vmatpush1.bf16.msra.mxu0 %v501
  %1537 = vmatprep.subr.bf16.mxu0 %v505
  %1538 = vmatpush1.bf16.msra.mxu0 %v504
  %1539 = vmatprep.subr.bf16.mxu0 %v508
  %1540 = vmatpush1.bf16.msra.mxu0 %v507
  %1541 = vmatprep.subr.bf16.mxu0 %v511
  %1542 = vmatpush1.bf16.msra.mxu0 %v510
  %1543 = vmatprep.subr.bf16.mxu0 %v514
  %1544 = vmatpush1.bf16.msra.mxu0 %v513
  %1545 = vmatprep.subr.bf16.mxu0 %v517
  %1546 = vmatpush1.bf16.msra.mxu0 %v516
  %1547 = vmatprep.subr.bf16.mxu0 0
  %1548 = vmatpush1.bf16.msra.mxu0 0
  %1549 = vmatprep.subr.bf16.mxu0 0
  %1550 = vmatpush1.bf16.msra.mxu0 0
  %1551 = vmatprep.subr.bf16.mxu0 0
  %1552 = vmatpush1.bf16.msra.mxu0 0
  %1553 = vmatprep.subr.bf16.mxu0 0
  %1554 = vmatpush1.bf16.msra.mxu0 0
  %1555 = vmatprep.subr.bf16.mxu0 0
  %1556 = vmatpush1.bf16.msra.mxu0 0
  %1557 = vmatprep.subr.bf16.mxu0 0
  %1558 = vmatpush1.bf16.msra.mxu0 0
  %1559 = vmatprep.subr.bf16.mxu0 0
  %1560 = vmatpush1.bf16.msra.mxu0 0
  %1561 = vmatprep.subr.bf16.mxu0 0
  %1562 = vmatpush1.bf16.msra.mxu0 0
  %1563 = vmatprep.mubr.bf16.mxu0 0
  %1564 = vmatmul.mubr.bf16.gmra.mrb[0].mxu0 %v1530
  %v1565 = vpop.f32.mrb[0].mxu0
  %v1566 = vadd.f32 0.0, %v1565
  %v1567 = vpop.f32.mrb[0].mxu0
  %v1568 = vadd.f32 0.0, %v1567
  %v1569 = vpop.f32.mrb[0].mxu0
  %v1570 = vpop.f32.mrb[0].mxu0
  %1571 = vdwg.mxu0
  %1572 = vmatprep.subr.bf16.mxu0 0
  %1573 = vmatpush1.bf16.msra.mxu0 %v497
  %1574 = vmatprep.subr.bf16.mxu0 0
  %1575 = vmatpush1.bf16.msra.mxu0 %v500
  %1576 = vmatprep.subr.bf16.mxu0 0
  %1577 = vmatpush1.bf16.msra.mxu0 %v503
  %1578 = vmatprep.subr.bf16.mxu0 0
  %1579 = vmatpush1.bf16.msra.mxu0 %v506
  %1580 = vmatprep.subr.bf16.mxu0 0
  %1581 = vmatpush1.bf16.msra.mxu0 %v509
  %1582 = vmatprep.subr.bf16.mxu0 0
  %1583 = vmatpush1.bf16.msra.mxu0 %v512
  %1584 = vmatprep.subr.bf16.mxu0 0
  %1585 = vmatpush1.bf16.msra.mxu0 %v515
  %1586 = vmatprep.subr.bf16.mxu0 0
  %1587 = vmatpush1.bf16.msra.mxu0 %v518
  %1588 = vmatprep.subr.bf16.mxu0 0
  %1589 = vmatpush1.bf16.msra.mxu0 0
  %1590 = vmatprep.subr.bf16.mxu0 0
  %1591 = vmatpush1.bf16.msra.mxu0 0
  %1592 = vmatprep.subr.bf16.mxu0 0
  %1593 = vmatpush1.bf16.msra.mxu0 0
  %1594 = vmatprep.subr.bf16.mxu0 0
  %1595 = vmatpush1.bf16.msra.mxu0 0
  %1596 = vmatprep.subr.bf16.mxu0 0
  %1597 = vmatpush1.bf16.msra.mxu0 0
  %1598 = vmatprep.subr.bf16.mxu0 0
  %1599 = vmatpush1.bf16.msra.mxu0 0
  %1600 = vmatprep.subr.bf16.mxu0 0
  %1601 = vmatpush1.bf16.msra.mxu0 0
  %1602 = vmatprep.subr.bf16.mxu0 0
  %1603 = vmatpush1.bf16.msra.mxu0 0
  %1604 = vmatprep.mubr.bf16.mxu0 0
  %1605 = vmatmul.mubr.bf16.gmra.mrb[0].mxu0 %v1530
  %v1606 = vpop.f32.mrb[0].mxu0
  %v1607 = vadd.f32 0.0, %v1606
  %v1608 = vpop.f32.mrb[0].mxu0
  %v1609 = vpop.f32.mrb[0].mxu0
  %v1610 = vpop.f32.mrb[0].mxu0
  %1611 = vdwg.mxu0
  %v1612 = vadd.f32 %v1399, %v1566
  %v1613 = vadd.f32 %v1400, %v1568
  %v1614 = vadd.f32 %v1401, %v1607
  %v1615 = vadd.f32 %v1612, %v1438
  %v1616 = vadd.f32 %v1613, %v1440
  %v1617 = vxor.u32 %v1615, 2147483648
  %v1618 = vxor.u32 %v1616, 2147483648
  %v1619 = vmul.f32 %v1617, 1.442695
  %v1620 = vpow.pop %v1619
  %v1621 = vmul.f32 %v1618, 1.442695
  %v1622 = vpow.pop %v1621
  %v1623 = vadd.f32 %v1620, 1.0
  %v1624 = vadd.f32 %v1622, 1.0
  %v1625 = vrcp.pop %v1623
  %v1626 = vmul.f32 1.0, %v1625
  %v1627 = vrcp.pop %v1624
  %v1628 = vmul.f32 1.0, %v1627
  %v1629 = vmul.f32 %v1626, %v1479
  %v1630 = vadd.f32 %v1614, %v1629
  %v1631 = vtanh.pop %v1630
  %v1632 = vsub.f32 1.0, %v1628
  %v1633 = vmul.f32 %v1632, %v1631
  %v1634 = vmul.f32 %v1628, %v1397
  %v1635 = vadd.f32 %v1633, %v1634
  %s1636 = scalar_lea.vmem %s5, 40
  %v1637 = vld [vmem:[%s1636] sm:$0xff]
  %vm1638 = vcmp.ne.f32.partialorder %v1637, 0.0
  %v1639 = vsel %vm1638, 1, 0
  %1640 = vset.pattern.permute.xlu0 0
  %1641 = vperm.xlu0 %1640, %v1639
  %v1642 = vpop.permute.xlu0 %1641
  %vm1643 = vcmp.eq.s32.totalorder %v1642, 1
  %v1644 = vsel %vm1643, %v1635, %v1397
  %s1645 = scalar_lea.vmem %s0, 144
  %v1646 = vld [vmem:[%s1645] sm:$0xff]
  %v1647 = vld [vmem:[%s1645 + $0x8] sm:$0xff]
  %v1648 = vld [vmem:[%s1645 + $0x10] sm:$0xff]
  %v1649 = vpack.c.bf16 %v1644, %v1644
  %1650 = vmatprep.subr.bf16.mxu0 %v143
  %1651 = vmatpush1.bf16.msra.mxu0 %v142
  %1652 = vmatprep.subr.bf16.mxu0 %v146
  %1653 = vmatpush1.bf16.msra.mxu0 %v145
  %1654 = vmatprep.subr.bf16.mxu0 %v149
  %1655 = vmatpush1.bf16.msra.mxu0 %v148
  %1656 = vmatprep.subr.bf16.mxu0 %v152
  %1657 = vmatpush1.bf16.msra.mxu0 %v151
  %1658 = vmatprep.subr.bf16.mxu0 %v155
  %1659 = vmatpush1.bf16.msra.mxu0 %v154
  %1660 = vmatprep.subr.bf16.mxu0 %v158
  %1661 = vmatpush1.bf16.msra.mxu0 %v157
  %1662 = vmatprep.subr.bf16.mxu0 %v161
  %1663 = vmatpush1.bf16.msra.mxu0 %v160
  %1664 = vmatprep.subr.bf16.mxu0 %v164
  %1665 = vmatpush1.bf16.msra.mxu0 %v163
  %1666 = vmatprep.subr.bf16.mxu0 0
  %1667 = vmatpush1.bf16.msra.mxu0 0
  %1668 = vmatprep.subr.bf16.mxu0 0
  %1669 = vmatpush1.bf16.msra.mxu0 0
  %1670 = vmatprep.subr.bf16.mxu0 0
  %1671 = vmatpush1.bf16.msra.mxu0 0
  %1672 = vmatprep.subr.bf16.mxu0 0
  %1673 = vmatpush1.bf16.msra.mxu0 0
  %1674 = vmatprep.subr.bf16.mxu0 0
  %1675 = vmatpush1.bf16.msra.mxu0 0
  %1676 = vmatprep.subr.bf16.mxu0 0
  %1677 = vmatpush1.bf16.msra.mxu0 0
  %1678 = vmatprep.subr.bf16.mxu0 0
  %1679 = vmatpush1.bf16.msra.mxu0 0
  %1680 = vmatprep.subr.bf16.mxu0 0
  %1681 = vmatpush1.bf16.msra.mxu0 0
  %1682 = vmatprep.mubr.bf16.mxu0 0
  %1683 = vmatmul.mubr.bf16.gmra.mrb[0].mxu0 %v1649
  %v1684 = vpop.f32.mrb[0].mxu0
  %v1685 = vadd.f32 0.0, %v1684
  %v1686 = vpop.f32.mrb[0].mxu0
  %v1687 = vadd.f32 0.0, %v1686
  %v1688 = vpop.f32.mrb[0].mxu0
  %v1689 = vpop.f32.mrb[0].mxu0
  %1690 = vdwg.mxu0
  %1691 = vmatprep.subr.bf16.mxu0 0
  %1692 = vmatpush1.bf16.msra.mxu0 %v144
  %1693 = vmatprep.subr.bf16.mxu0 0
  %1694 = vmatpush1.bf16.msra.mxu0 %v147
  %1695 = vmatprep.subr.bf16.mxu0 0
  %1696 = vmatpush1.bf16.msra.mxu0 %v150
  %1697 = vmatprep.subr.bf16.mxu0 0
  %1698 = vmatpush1.bf16.msra.mxu0 %v153
  %1699 = vmatprep.subr.bf16.mxu0 0
  %1700 = vmatpush1.bf16.msra.mxu0 %v156
  %1701 = vmatprep.subr.bf16.mxu0 0
  %1702 = vmatpush1.bf16.msra.mxu0 %v159
  %1703 = vmatprep.subr.bf16.mxu0 0
  %1704 = vmatpush1.bf16.msra.mxu0 %v162
  %1705 = vmatprep.subr.bf16.mxu0 0
  %1706 = vmatpush1.bf16.msra.mxu0 %v165
  %1707 = vmatprep.subr.bf16.mxu0 0
  %1708 = vmatpush1.bf16.msra.mxu0 0
  %1709 = vmatprep.subr.bf16.mxu0 0
  %1710 = vmatpush1.bf16.msra.mxu0 0
  %1711 = vmatprep.subr.bf16.mxu0 0
  %1712 = vmatpush1.bf16.msra.mxu0 0
  %1713 = vmatprep.subr.bf16.mxu0 0
  %1714 = vmatpush1.bf16.msra.mxu0 0
  %1715 = vmatprep.subr.bf16.mxu0 0
  %1716 = vmatpush1.bf16.msra.mxu0 0
  %1717 = vmatprep.subr.bf16.mxu0 0
  %1718 = vmatpush1.bf16.msra.mxu0 0
  %1719 = vmatprep.subr.bf16.mxu0 0
  %1720 = vmatpush1.bf16.msra.mxu0 0
  %1721 = vmatprep.subr.bf16.mxu0 0
  %1722 = vmatpush1.bf16.msra.mxu0 0
  %1723 = vmatprep.mubr.bf16.mxu0 0
  %1724 = vmatmul.mubr.bf16.gmra.mrb[0].mxu0 %v1649
  %v1725 = vpop.f32.mrb[0].mxu0
  %v1726 = vadd.f32 0.0, %v1725
  %v1727 = vpop.f32.mrb[0].mxu0
  %v1728 = vpop.f32.mrb[0].mxu0
  %v1729 = vpop.f32.mrb[0].mxu0
  %1730 = vdwg.mxu0
  %1731 = vmatprep.subr.bf16.mxu0 0
  %1732 = vmatpush1.bf16.msra.mxu0 %v320
  %1733 = vmatprep.subr.bf16.mxu0 0
  %1734 = vmatpush1.bf16.msra.mxu0 %v321
  %1735 = vmatprep.subr.bf16.mxu0 0
  %1736 = vmatpush1.bf16.msra.mxu0 %v322
  %1737 = vmatprep.subr.bf16.mxu0 0
  %1738 = vmatpush1.bf16.msra.mxu0 %v323
  %1739 = vmatprep.subr.bf16.mxu0 0
  %1740 = vmatpush1.bf16.msra.mxu0 %v324
  %1741 = vmatprep.subr.bf16.mxu0 0
  %1742 = vmatpush1.bf16.msra.mxu0 %v325
  %1743 = vmatprep.subr.bf16.mxu0 0
  %1744 = vmatpush1.bf16.msra.mxu0 %v326
  %1745 = vmatprep.subr.bf16.mxu0 0
  %1746 = vmatpush1.bf16.msra.mxu0 %v327
  %1747 = vmatprep.subr.bf16.mxu0 0
  %1748 = vmatpush1.bf16.msra.mxu0 0
  %1749 = vmatprep.subr.bf16.mxu0 0
  %1750 = vmatpush1.bf16.msra.mxu0 0
  %1751 = vmatprep.subr.bf16.mxu0 0
  %1752 = vmatpush1.bf16.msra.mxu0 0
  %1753 = vmatprep.subr.bf16.mxu0 0
  %1754 = vmatpush1.bf16.msra.mxu0 0
  %1755 = vmatprep.subr.bf16.mxu0 0
  %1756 = vmatpush1.bf16.msra.mxu0 0
  %1757 = vmatprep.subr.bf16.mxu0 0
  %1758 = vmatpush1.bf16.msra.mxu0 0
  %1759 = vmatprep.subr.bf16.mxu0 0
  %1760 = vmatpush1.bf16.msra.mxu0 0
  %1761 = vmatprep.subr.bf16.mxu0 0
  %1762 = vmatpush1.bf16.msra.mxu0 0
  %1763 = vmatprep.mubr.bf16.mxu0 0
  %1764 = vmatmul.mubr.bf16.gmra.mrb[0].mxu0 %v1649
  %v1765 = vpop.f32.mrb[0].mxu0
  %v1766 = vadd.f32 %v287, %v1765
  %v1767 = vpop.f32.mrb[0].mxu0
  %v1768 = vpop.f32.mrb[0].mxu0
  %v1769 = vpop.f32.mrb[0].mxu0
  %1770 = vdwg.mxu0
  %v1771 = vmul.f32 %v1766, 1.442695
  %v1772 = vpow.pop %v1771
  %1773 = vadd.xlane.f32.xlu0 %v1772
  %v1774 = vpop.xlane.xlu0 %1773
  %v1775 = vrcp.pop %v1774
  %v1776 = vmul.f32 %v1772, %v1775
  %v1777 = vpack.c.bf16 %v1776, %v1776
  %1778 = vmatprep.subr.bf16.mxu0 %v496
  %1779 = vmatpush1.bf16.msra.mxu0 %v495
  %1780 = vmatprep.subr.bf16.mxu0 %v499
  %1781 = vmatpush1.bf16.msra.mxu0 %v498
  %1782 = vmatprep.subr.bf16.mxu0 %v502
  %1783 = vmatpush1.bf16.msra.mxu0 %v501
  %1784 = vmatprep.subr.bf16.mxu0 %v505
  %1785 = vmatpush1.bf16.msra.mxu0 %v504
  %1786 = vmatprep.subr.bf16.mxu0 %v508
  %1787 = vmatpush1.bf16.msra.mxu0 %v507
  %1788 = vmatprep.subr.bf16.mxu0 %v511
  %1789 = vmatpush1.bf16.msra.mxu0 %v510
  %1790 = vmatprep.subr.bf16.mxu0 %v514
  %1791 = vmatpush1.bf16.msra.mxu0 %v513
  %1792 = vmatprep.subr.bf16.mxu0 %v517
  %1793 = vmatpush1.bf16.msra.mxu0 %v516
  %1794 = vmatprep.subr.bf16.mxu0 0
  %1795 = vmatpush1.bf16.msra.mxu0 0
  %1796 = vmatprep.subr.bf16.mxu0 0
  %1797 = vmatpush1.bf16.msra.mxu0 0
  %1798 = vmatprep.subr.bf16.mxu0 0
  %1799 = vmatpush1.bf16.msra.mxu0 0
  %1800 = vmatprep.subr.bf16.mxu0 0
  %1801 = vmatpush1.bf16.msra.mxu0 0
  %1802 = vmatprep.subr.bf16.mxu0 0
  %1803 = vmatpush1.bf16.msra.mxu0 0
  %1804 = vmatprep.subr.bf16.mxu0 0
  %1805 = vmatpush1.bf16.msra.mxu0 0
  %1806 = vmatprep.subr.bf16.mxu0 0
  %1807 = vmatpush1.bf16.msra.mxu0 0
  %1808 = vmatprep.subr.bf16.mxu0 0
  %1809 = vmatpush1.bf16.msra.mxu0 0
  %1810 = vmatprep.mubr.bf16.mxu0 0
  %1811 = vmatmul.mubr.bf16.gmra.mrb[0].mxu0 %v1777
  %v1812 = vpop.f32.mrb[0].mxu0
  %v1813 = vadd.f32 0.0, %v1812
  %v1814 = vpop.f32.mrb[0].mxu0
  %v1815 = vadd.f32 0.0, %v1814
  %v1816 = vpop.f32.mrb[0].mxu0
  %v1817 = vpop.f32.mrb[0].mxu0
  %1818 = vdwg.mxu0
  %1819 = vmatprep.subr.bf16.mxu0 0
  %1820 = vmatpush1.bf16.msra.mxu0 %v497
  %1821 = vmatprep.subr.bf16.mxu0 0
  %1822 = vmatpush1.bf16.msra.mxu0 %v500
  %1823 = vmatprep.subr.bf16.mxu0 0
  %1824 = vmatpush1.bf16.msra.mxu0 %v503
  %1825 = vmatprep.subr.bf16.mxu0 0
  %1826 = vmatpush1.bf16.msra.mxu0 %v506
  %1827 = vmatprep.subr.bf16.mxu0 0
  %1828 = vmatpush1.bf16.msra.mxu0 %v509
  %1829 = vmatprep.subr.bf16.mxu0 0
  %1830 = vmatpush1.bf16.msra.mxu0 %v512
  %1831 = vmatprep.subr.bf16.mxu0 0
  %1832 = vmatpush1.bf16.msra.mxu0 %v515
  %1833 = vmatprep.subr.bf16.mxu0 0
  %1834 = vmatpush1.bf16.msra.mxu0 %v518
  %1835 = vmatprep.subr.bf16.mxu0 0
  %1836 = vmatpush1.bf16.msra.mxu0 0
  %1837 = vmatprep.subr.bf16.mxu0 0
  %1838 = vmatpush1.bf16.msra.mxu0 0
  %1839 = vmatprep.subr.bf16.mxu0 0
  %1840 = vmatpush1.bf16.msra.mxu0 0
  %1841 = vmatprep.subr.bf16.mxu0 0
  %1842 = vmatpush1.bf16.msra.mxu0 0
  %1843 = vmatprep.subr.bf16.mxu0 0
  %1844 = vmatpush1.bf16.msra.mxu0 0
  %1845 = vmatprep.subr.bf16.mxu0 0
  %1846 = vmatpush1.bf16.msra.mxu0 0
  %1847 = vmatprep.subr.bf16.mxu0 0
  %1848 = vmatpush1.bf16.msra.mxu0 0
  %1849 = vmatprep.subr.bf16.mxu0 0
  %1850 = vmatpush1.bf16.msra.mxu0 0
  %1851 = vmatprep.mubr.bf16.mxu0 0
  %1852 = vmatmul.mubr.bf16.gmra.mrb[0].mxu0 %v1777
  %v1853 = vpop.f32.mrb[0].mxu0
  %v1854 = vadd.f32 0.0, %v1853
  %v1855 = vpop.f32.mrb[0].mxu0
  %v1856 = vpop.f32.mrb[0].mxu0
  %v1857 = vpop.f32.mrb[0].mxu0
  %1858 = vdwg.mxu0
  %v1859 = vadd.f32 %v1646, %v1813
  %v1860 = vadd.f32 %v1647, %v1815
  %v1861 = vadd.f32 %v1648, %v1854
  %v1862 = vadd.f32 %v1859, %v1685
  %v1863 = vadd.f32 %v1860, %v1687
  %v1864 = vxor.u32 %v1862, 2147483648
  %v1865 = vxor.u32 %v1863, 2147483648
  %v1866 = vmul.f32 %v1864, 1.442695
  %v1867 = vpow.pop %v1866
  %v1868 = vmul.f32 %v1865, 1.442695
  %v1869 = vpow.pop %v1868
  %v1870 = vadd.f32 %v1867, 1.0
  %v1871 = vadd.f32 %v1869, 1.0
  %v1872 = vrcp.pop %v1870
  %v1873 = vmul.f32 1.0, %v1872
  %v1874 = vrcp.pop %v1871
  %v1875 = vmul.f32 1.0, %v1874
  %v1876 = vmul.f32 %v1873, %v1726
  %v1877 = vadd.f32 %v1861, %v1876
  %v1878 = vtanh.pop %v1877
  %v1879 = vsub.f32 1.0, %v1875
  %v1880 = vmul.f32 %v1879, %v1878
  %v1881 = vmul.f32 %v1875, %v1644
  %v1882 = vadd.f32 %v1880, %v1881
  %s1883 = scalar_lea.vmem %s5, 48
  %v1884 = vld [vmem:[%s1883] sm:$0xff]
  %vm1885 = vcmp.ne.f32.partialorder %v1884, 0.0
  %v1886 = vsel %vm1885, 1, 0
  %1887 = vset.pattern.permute.xlu0 0
  %1888 = vperm.xlu0 %1887, %v1886
  %v1889 = vpop.permute.xlu0 %1888
  %vm1890 = vcmp.eq.s32.totalorder %v1889, 1
  %v1891 = vsel %vm1890, %v1882, %v1644
  %s1892 = scalar_lea.vmem %s0, 168
  %v1893 = vld [vmem:[%s1892] sm:$0xff]
  %v1894 = vld [vmem:[%s1892 + $0x8] sm:$0xff]
  %v1895 = vld [vmem:[%s1892 + $0x10] sm:$0xff]
  %v1896 = vpack.c.bf16 %v1891, %v1891
  %1897 = vmatprep.subr.bf16.mxu0 %v143
  %1898 = vmatpush1.bf16.msra.mxu0 %v142
  %1899 = vmatprep.subr.bf16.mxu0 %v146
  %1900 = vmatpush1.bf16.msra.mxu0 %v145
  %1901 = vmatprep.subr.bf16.mxu0 %v149
  %1902 = vmatpush1.bf16.msra.mxu0 %v148
  %1903 = vmatprep.subr.bf16.mxu0 %v152
  %1904 = vmatpush1.bf16.msra.mxu0 %v151
  %1905 = vmatprep.subr.bf16.mxu0 %v155
  %1906 = vmatpush1.bf16.msra.mxu0 %v154
  %1907 = vmatprep.subr.bf16.mxu0 %v158
  %1908 = vmatpush1.bf16.msra.mxu0 %v157
  %1909 = vmatprep.subr.bf16.mxu0 %v161
  %1910 = vmatpush1.bf16.msra.mxu0 %v160
  %1911 = vmatprep.subr.bf16.mxu0 %v164
  %1912 = vmatpush1.bf16.msra.mxu0 %v163
  %1913 = vmatprep.subr.bf16.mxu0 0
  %1914 = vmatpush1.bf16.msra.mxu0 0
  %1915 = vmatprep.subr.bf16.mxu0 0
  %1916 = vmatpush1.bf16.msra.mxu0 0
  %1917 = vmatprep.subr.bf16.mxu0 0
  %1918 = vmatpush1.bf16.msra.mxu0 0
  %1919 = vmatprep.subr.bf16.mxu0 0
  %1920 = vmatpush1.bf16.msra.mxu0 0
  %1921 = vmatprep.subr.bf16.mxu0 0
  %1922 = vmatpush1.bf16.msra.mxu0 0
  %1923 = vmatprep.subr.bf16.mxu0 0
  %1924 = vmatpush1.bf16.msra.mxu0 0
  %1925 = vmatprep.subr.bf16.mxu0 0
  %1926 = vmatpush1.bf16.msra.mxu0 0
  %1927 = vmatprep.subr.bf16.mxu0 0
  %1928 = vmatpush1.bf16.msra.mxu0 0
  %1929 = vmatprep.mubr.bf16.mxu0 0
  %1930 = vmatmul.mubr.bf16.gmra.mrb[0].mxu0 %v1896
  %v1931 = vpop.f32.mrb[0].mxu0
  %v1932 = vadd.f32 0.0, %v1931
  %v1933 = vpop.f32.mrb[0].mxu0
  %v1934 = vadd.f32 0.0, %v1933
  %v1935 = vpop.f32.mrb[0].mxu0
  %v1936 = vpop.f32.mrb[0].mxu0
  %1937 = vdwg.mxu0
  %1938 = vmatprep.subr.bf16.mxu0 0
  %1939 = vmatpush1.bf16.msra.mxu0 %v144
  %1940 = vmatprep.subr.bf16.mxu0 0
  %1941 = vmatpush1.bf16.msra.mxu0 %v147
  %1942 = vmatprep.subr.bf16.mxu0 0
  %1943 = vmatpush1.bf16.msra.mxu0 %v150
  %1944 = vmatprep.subr.bf16.mxu0 0
  %1945 = vmatpush1.bf16.msra.mxu0 %v153
  %1946 = vmatprep.subr.bf16.mxu0 0
  %1947 = vmatpush1.bf16.msra.mxu0 %v156
  %1948 = vmatprep.subr.bf16.mxu0 0
  %1949 = vmatpush1.bf16.msra.mxu0 %v159
  %1950 = vmatprep.subr.bf16.mxu0 0
  %1951 = vmatpush1.bf16.msra.mxu0 %v162
  %1952 = vmatprep.subr.bf16.mxu0 0
  %1953 = vmatpush1.bf16.msra.mxu0 %v165
  %1954 = vmatprep.subr.bf16.mxu0 0
  %1955 = vmatpush1.bf16.msra.mxu0 0
  %1956 = vmatprep.subr.bf16.mxu0 0
  %1957 = vmatpush1.bf16.msra.mxu0 0
  %1958 = vmatprep.subr.bf16.mxu0 0
  %1959 = vmatpush1.bf16.msra.mxu0 0
  %1960 = vmatprep.subr.bf16.mxu0 0
  %1961 = vmatpush1.bf16.msra.mxu0 0
  %1962 = vmatprep.subr.bf16.mxu0 0
  %1963 = vmatpush1.bf16.msra.mxu0 0
  %1964 = vmatprep.subr.bf16.mxu0 0
  %1965 = vmatpush1.bf16.msra.mxu0 0
  %1966 = vmatprep.subr.bf16.mxu0 0
  %1967 = vmatpush1.bf16.msra.mxu0 0
  %1968 = vmatprep.subr.bf16.mxu0 0
  %1969 = vmatpush1.bf16.msra.mxu0 0
  %1970 = vmatprep.mubr.bf16.mxu0 0
  %1971 = vmatmul.mubr.bf16.gmra.mrb[0].mxu0 %v1896
  %v1972 = vpop.f32.mrb[0].mxu0
  %v1973 = vadd.f32 0.0, %v1972
  %v1974 = vpop.f32.mrb[0].mxu0
  %v1975 = vpop.f32.mrb[0].mxu0
  %v1976 = vpop.f32.mrb[0].mxu0
  %1977 = vdwg.mxu0
  %1978 = vmatprep.subr.bf16.mxu0 0
  %1979 = vmatpush1.bf16.msra.mxu0 %v320
  %1980 = vmatprep.subr.bf16.mxu0 0
  %1981 = vmatpush1.bf16.msra.mxu0 %v321
  %1982 = vmatprep.subr.bf16.mxu0 0
  %1983 = vmatpush1.bf16.msra.mxu0 %v322
  %1984 = vmatprep.subr.bf16.mxu0 0
  %1985 = vmatpush1.bf16.msra.mxu0 %v323
  %1986 = vmatprep.subr.bf16.mxu0 0
  %1987 = vmatpush1.bf16.msra.mxu0 %v324
  %1988 = vmatprep.subr.bf16.mxu0 0
  %1989 = vmatpush1.bf16.msra.mxu0 %v325
  %1990 = vmatprep.subr.bf16.mxu0 0
  %1991 = vmatpush1.bf16.msra.mxu0 %v326
  %1992 = vmatprep.subr.bf16.mxu0 0
  %1993 = vmatpush1.bf16.msra.mxu0 %v327
  %1994 = vmatprep.subr.bf16.mxu0 0
  %1995 = vmatpush1.bf16.msra.mxu0 0
  %1996 = vmatprep.subr.bf16.mxu0 0
  %1997 = vmatpush1.bf16.msra.mxu0 0
  %1998 = vmatprep.subr.bf16.mxu0 0
  %1999 = vmatpush1.bf16.msra.mxu0 0
  %2000 = vmatprep.subr.bf16.mxu0 0
  %2001 = vmatpush1.bf16.msra.mxu0 0
  %2002 = vmatprep.subr.bf16.mxu0 0
  %2003 = vmatpush1.bf16.msra.mxu0 0
  %2004 = vmatprep.subr.bf16.mxu0 0
  %2005 = vmatpush1.bf16.msra.mxu0 0
  %2006 = vmatprep.subr.bf16.mxu0 0
  %2007 = vmatpush1.bf16.msra.mxu0 0
  %2008 = vmatprep.subr.bf16.mxu0 0
  %2009 = vmatpush1.bf16.msra.mxu0 0
  %2010 = vmatprep.mubr.bf16.mxu0 0
  %2011 = vmatmul.mubr.bf16.gmra.mrb[0].mxu0 %v1896
  %v2012 = vpop.f32.mrb[0].mxu0
  %v2013 = vadd.f32 %v287, %v2012
  %v2014 = vpop.f32.mrb[0].mxu0
  %v2015 = vpop.f32.mrb[0].mxu0
  %v2016 = vpop.f32.mrb[0].mxu0
  %2017 = vdwg.mxu0
  %v2018 = vmul.f32 %v2013, 1.442695
  %v2019 = vpow.pop %v2018
  %2020 = vadd.xlane.f32.xlu0 %v2019
  %v2021 = vpop.xlane.xlu0 %2020
  %v2022 = vrcp.pop %v2021
  %v2023 = vmul.f32 %v2019, %v2022
  %v2024 = vpack.c.bf16 %v2023, %v2023
  %2025 = vmatprep.subr.bf16.mxu0 %v496
  %2026 = vmatpush1.bf16.msra.mxu0 %v495
  %2027 = vmatprep.subr.bf16.mxu0 %v499
  %2028 = vmatpush1.bf16.msra.mxu0 %v498
  %2029 = vmatprep.subr.bf16.mxu0 %v502
  %2030 = vmatpush1.bf16.msra.mxu0 %v501
  %2031 = vmatprep.subr.bf16.mxu0 %v505
  %2032 = vmatpush1.bf16.msra.mxu0 %v504
  %2033 = vmatprep.subr.bf16.mxu0 %v508
  %2034 = vmatpush1.bf16.msra.mxu0 %v507
  %2035 = vmatprep.subr.bf16.mxu0 %v511
  %2036 = vmatpush1.bf16.msra.mxu0 %v510
  %2037 = vmatprep.subr.bf16.mxu0 %v514
  %2038 = vmatpush1.bf16.msra.mxu0 %v513
  %2039 = vmatprep.subr.bf16.mxu0 %v517
  %2040 = vmatpush1.bf16.msra.mxu0 %v516
  %2041 = vmatprep.subr.bf16.mxu0 0
  %2042 = vmatpush1.bf16.msra.mxu0 0
  %2043 = vmatprep.subr.bf16.mxu0 0
  %2044 = vmatpush1.bf16.msra.mxu0 0
  %2045 = vmatprep.subr.bf16.mxu0 0
  %2046 = vmatpush1.bf16.msra.mxu0 0
  %2047 = vmatprep.subr.bf16.mxu0 0
  %2048 = vmatpush1.bf16.msra.mxu0 0
  %2049 = vmatprep.subr.bf16.mxu0 0
  %2050 = vmatpush1.bf16.msra.mxu0 0
  %2051 = vmatprep.subr.bf16.mxu0 0
  %2052 = vmatpush1.bf16.msra.mxu0 0
  %2053 = vmatprep.subr.bf16.mxu0 0
  %2054 = vmatpush1.bf16.msra.mxu0 0
  %2055 = vmatprep.subr.bf16.mxu0 0
  %2056 = vmatpush1.bf16.msra.mxu0 0
  %2057 = vmatprep.mubr.bf16.mxu0 0
  %2058 = vmatmul.mubr.bf16.gmra.mrb[0].mxu0 %v2024
  %v2059 = vpop.f32.mrb[0].mxu0
  %v2060 = vadd.f32 0.0, %v2059
  %v2061 = vpop.f32.mrb[0].mxu0
  %v2062 = vadd.f32 0.0, %v2061
  %v2063 = vpop.f32.mrb[0].mxu0
  %v2064 = vpop.f32.mrb[0].mxu0
  %2065 = vdwg.mxu0
  %2066 = vmatprep.subr.bf16.mxu0 0
  %2067 = vmatpush1.bf16.msra.mxu0 %v497
  %2068 = vmatprep.subr.bf16.mxu0 0
  %2069 = vmatpush1.bf16.msra.mxu0 %v500
  %2070 = vmatprep.subr.bf16.mxu0 0
  %2071 = vmatpush1.bf16.msra.mxu0 %v503
  %2072 = vmatprep.subr.bf16.mxu0 0
  %2073 = vmatpush1.bf16.msra.mxu0 %v506
  %2074 = vmatprep.subr.bf16.mxu0 0
  %2075 = vmatpush1.bf16.msra.mxu0 %v509
  %2076 = vmatprep.subr.bf16.mxu0 0
  %2077 = vmatpush1.bf16.msra.mxu0 %v512
  %2078 = vmatprep.subr.bf16.mxu0 0
  %2079 = vmatpush1.bf16.msra.mxu0 %v515
  %2080 = vmatprep.subr.bf16.mxu0 0
  %2081 = vmatpush1.bf16.msra.mxu0 %v518
  %2082 = vmatprep.subr.bf16.mxu0 0
  %2083 = vmatpush1.bf16.msra.mxu0 0
  %2084 = vmatprep.subr.bf16.mxu0 0
  %2085 = vmatpush1.bf16.msra.mxu0 0
  %2086 = vmatprep.subr.bf16.mxu0 0
  %2087 = vmatpush1.bf16.msra.mxu0 0
  %2088 = vmatprep.subr.bf16.mxu0 0
  %2089 = vmatpush1.bf16.msra.mxu0 0
  %2090 = vmatprep.subr.bf16.mxu0 0
  %2091 = vmatpush1.bf16.msra.mxu0 0
  %2092 = vmatprep.subr.bf16.mxu0 0
  %2093 = vmatpush1.bf16.msra.mxu0 0
  %2094 = vmatprep.subr.bf16.mxu0 0
  %2095 = vmatpush1.bf16.msra.mxu0 0
  %2096 = vmatprep.subr.bf16.mxu0 0
  %2097 = vmatpush1.bf16.msra.mxu0 0
  %2098 = vmatprep.mubr.bf16.mxu0 0
  %2099 = vmatmul.mubr.bf16.gmra.mrb[0].mxu0 %v2024
  %v2100 = vpop.f32.mrb[0].mxu0
  %v2101 = vadd.f32 0.0, %v2100
  %v2102 = vpop.f32.mrb[0].mxu0
  %v2103 = vpop.f32.mrb[0].mxu0
  %v2104 = vpop.f32.mrb[0].mxu0
  %2105 = vdwg.mxu0
  %v2106 = vadd.f32 %v1893, %v2060
  %v2107 = vadd.f32 %v1894, %v2062
  %v2108 = vadd.f32 %v1895, %v2101
  %v2109 = vadd.f32 %v2106, %v1932
  %v2110 = vadd.f32 %v2107, %v1934
  %v2111 = vxor.u32 %v2109, 2147483648
  %v2112 = vxor.u32 %v2110, 2147483648
  %v2113 = vmul.f32 %v2111, 1.442695
  %v2114 = vpow.pop %v2113
  %v2115 = vmul.f32 %v2112, 1.442695
  %v2116 = vpow.pop %v2115
  %v2117 = vadd.f32 %v2114, 1.0
  %v2118 = vadd.f32 %v2116, 1.0
  %v2119 = vrcp.pop %v2117
  %v2120 = vmul.f32 1.0, %v2119
  %v2121 = vrcp.pop %v2118
  %v2122 = vmul.f32 1.0, %v2121
  %v2123 = vmul.f32 %v2120, %v1973
  %v2124 = vadd.f32 %v2108, %v2123
  %v2125 = vtanh.pop %v2124
  %v2126 = vsub.f32 1.0, %v2122
  %v2127 = vmul.f32 %v2126, %v2125
  %v2128 = vmul.f32 %v2122, %v1891
  %v2129 = vadd.f32 %v2127, %v2128
  %s2130 = scalar_lea.vmem %s5, 56
  %v2131 = vld [vmem:[%s2130] sm:$0xff]
  %vm2132 = vcmp.ne.f32.partialorder %v2131, 0.0
  %v2133 = vsel %vm2132, 1, 0
  %2134 = vset.pattern.permute.xlu0 0
  %2135 = vperm.xlu0 %2134, %v2133
  %v2136 = vpop.permute.xlu0 %2135
  %vm2137 = vcmp.eq.s32.totalorder %v2136, 1
  %v2138 = vsel %vm2137, %v2129, %v1891
  %2139 = vst [vmem:[%s6] sm:$0xff] %v2138
  // Predicated region
  $region26: #{_lambda_.1} parent=0 // pred_check
    _
  $region27: #{_lambda_.1} parent=0 // pred_check_branch
    %2141 = sbr.rel (0) target = $region29
  $region28: #{_lambda_.1} parent=0 // pred_region
    _
  $region29: #{_lambda_.1} parent=0 // pred_fallthru
    _
  // Predicated region
  $region30: #{_lambda_.1} parent=0 // pred_check
    _
  $region31: #{_lambda_.1} parent=0 // pred_check_branch
    %2143 = sbr.rel (0) target = $region33
  $region32: #{_lambda_.1} parent=0 // pred_region
    _
  $region33: #{_lambda_.1} parent=0 // pred_fallthru
    _

</llo_original>
